<compile_context>
chip_gen: v6e
topology: v6e:2x2x1
jax: 0.10.0
libtpu: 0.0.40
codegen_flags: <defaults>
</compile_context>

<pallas_src>
import numpy as np
import jax
import jax.numpy as jnp
from jax.experimental import pallas as pl
from jax.experimental.pallas import tpu as pltpu

# ----------------------------- model constants ------------------------------
V = 256                      # number of vertices (synthetic, small; multiple of 128)
NUM_BODY_JOINTS = 21
NUM_HAND_JOINTS = 15
NUM_FACE_JOINTS = 3          # jaw, leye, reye
J = 1 + NUM_BODY_JOINTS + NUM_FACE_JOINTS + 2 * NUM_HAND_JOINTS   # 55
J_PAD = 64                   # joint axis padded for aligned skinning matmul tiles
NUM_BETAS = 10
NUM_EXPR = 10
NUM_PCA = 6                  # use_pca=True -> hand_pose_dim = num_pca_comps
HAND_POSE_DIM = NUM_PCA
K_SHAPE = NUM_BETAS + NUM_EXPR          # 20
K_POSE = (J - 1) * 9                    # 486
K_TOTAL = K_SHAPE + K_POSE              # 506
K_PAD = 512                             # padded coefficient axis (clean (8,128) tiles)

# Vertex tile (lane axis), multiple of 128. For the real SMPL-X mesh (V=10475 -> pad to
# 10496) make this a per-generation parameter: ~2048-4096 on v7x (64 MiB VMEM),
# up to ~8192 on v5e/v6e (128 MiB VMEM) with vmem_limit_bytes raised accordingly.
VC = 128


# ------------------------------ Pallas kernel --------------------------------
def _lbs_kernel(coeffs_ref, dirs_ref, vt_ref, a_ref, w_ref, out_ref):
    # Grid = (vertex_chunk c, batch b).  Blocks seen by the kernel:
    #   coeffs_ref: (1, 1, K_PAD)     bf16  this batch's blendshape coefficients
    #   dirs_ref  : (3, K_PAD, VC)    bf16  blendshape directions for this vertex chunk
    #   vt_ref    : (3, 1, VC)        f32   template vertices for this chunk
    #   a_ref     : (1, 4, 3, J_PAD)  f32   rel. transforms: [rot col0, col1, col2, transl]
    #                                       (global translation already folded into col 3)
    #   w_ref     : (J_PAD, VC)       f32   skinning weights (transposed, joint-padded)
    #   out_ref   : (1, 3, VC)        f32   skinned vertices for (batch, chunk)
    c = coeffs_ref[0]                                                       # (1, K_PAD)

    # 1) blend shapes: posed-vertex x/y/z slabs, one lane-dense (1, VC) row each.
    px = vt_ref[0] + jnp.dot(c, dirs_ref[0], preferred_element_type=jnp.float32)
    py = vt_ref[1] + jnp.dot(c, dirs_ref[1], preferred_element_type=jnp.float32)
    pz = vt_ref[2] + jnp.dot(c, dirs_ref[2], preferred_element_type=jnp.float32)

    # 2) per-vertex 3x4 transform, one aligned (3, J_PAD) @ (J_PAD, VC) matmul per column
    #    (no sublane-misaligned value slices).
    w = w_ref[...]                                                          # (J_PAD, VC)
    tx = jnp.dot(a_ref[0, 0], w, preferred_element_type=jnp.float32)        # (3, VC)
    ty = jnp.dot(a_ref[0, 1], w, preferred_element_type=jnp.float32)
    tz = jnp.dot(a_ref[0, 2], w, preferred_element_type=jnp.float32)
    tt = jnp.dot(a_ref[0, 3], w, preferred_element_type=jnp.float32)        # incl. transl

    # 3) apply: rotation columns * posed xyz + translation, single lane-dense store.
    out_ref[0] = tx * px + ty * py + tz * pz + tt


def _lbs_pallas_call(coeffs, dirs, vt, a_pack, w_t):
    Bn = coeffs.shape[0]
    Kp = coeffs.shape[2]
    Jp, Vn = w_t.shape
    assert Vn % VC == 0, "pad V to a multiple of the vertex tile (multiple of 128)"
    num_chunks = Vn // VC
    return pl.pallas_call(
        _lbs_kernel,
        out_shape=jax.ShapeDtypeStruct((Bn, 3, Vn), jnp.float32),
        grid=(num_chunks, Bn),   # batch fastest -> dirs/w blocks stay resident per chunk
        in_specs=[
            pl.BlockSpec((1, 1, Kp), lambda c, b: (b, 0, 0)),
            pl.BlockSpec((3, Kp, VC), lambda c, b: (0, 0, c)),
            pl.BlockSpec((3, 1, VC), lambda c, b: (0, 0, c)),
            pl.BlockSpec((1, 4, 3, Jp), lambda c, b: (b, 0, 0, 0)),
            pl.BlockSpec((Jp, VC), lambda c, b: (0, c)),
        ],
        out_specs=pl.BlockSpec((1, 3, VC), lambda c, b: (b, 0, c)),
        compiler_params=pltpu.CompilerParams(
            dimension_semantics=("parallel", "parallel"),
            vmem_limit_bytes=32 * 1024 * 1024,   # v5e default scoped VMEM is only 16 MiB
        ),
    )(coeffs, dirs, vt, a_pack, w_t)


# ------------------------------- JAX glue ------------------------------------
def batch_rodrigues(rot_vecs):
    eps = 1e-8
    angle = jnp.linalg.norm(rot_vecs + eps, axis=1, keepdims=True)   # (N, 1)
    rot_dir = rot_vecs / angle
    cos = jnp.cos(angle)[..., None]                                  # (N, 1, 1)
    sin = jnp.sin(angle)[..., None]
    rx, ry, rz = rot_dir[:, 0], rot_dir[:, 1], rot_dir[:, 2]
    zeros = jnp.zeros_like(rx)
    Kmat = jnp.stack([zeros, -rz, ry, rz, zeros, -rx, -ry, rx, zeros],
                     axis=1).reshape(-1, 3, 3)
    ident = jnp.eye(3, dtype=rot_vecs.dtype)[None]
    return ident + sin * Kmat + (1.0 - cos) * jnp.matmul(Kmat, Kmat)


def batch_rigid_transform(rot_mats, joints, parents):
    # rot_mats: (B, J, 3, 3), joints: (B, J, 3); parents is a static numpy array.
    # Sequential tiny 4x4 chain over 55 joints -> plain JAX (no benefit in Pallas).
    Bn, Jn = joints.shape[0], joints.shape[1]
    rel_joints = joints.at[:, 1:].add(-joints[:, parents[1:]])
    rot_h = jnp.concatenate([rot_mats, rel_joints[..., None]], axis=-1)        # (B,J,3,4)
    bottom = jnp.broadcast_to(
        jnp.array([0.0, 0.0, 0.0, 1.0], jnp.float32), (Bn, Jn, 1, 4))
    transforms_mat = jnp.concatenate([rot_h, bottom], axis=-2)                 # (B,J,4,4)
    chain = [transforms_mat[:, 0]]
    for i in range(1, Jn):
        chain.append(jnp.matmul(chain[int(parents[i])], transforms_mat[:, i]))
    transforms = jnp.stack(chain, axis=1)                                      # (B,J,4,4)
    posed_joints = transforms[:, :, :3, 3]
    joints_h = jnp.concatenate(
        [joints, jnp.zeros((Bn, Jn, 1), jnp.float32)], axis=2)[..., None]      # (B,J,4,1)
    tj = jnp.matmul(transforms, joints_h)                                      # (B,J,4,1)
    rel_transforms = transforms - jnp.concatenate(
        [jnp.zeros((Bn, Jn, 4, 3), jnp.float32), tj], axis=3)
    return posed_joints, rel_transforms


def smplx_lbs(params, betas, global_orient, transl, body_pose,
              left_hand_pose, right_hand_pose, expression,
              jaw_pose, leye_pose, reye_pose, use_pallas=True):
    Bn = betas.shape[0]

    # hand PCA decode (+ hand mean, zero in this synthetic model)
    lh_full = left_hand_pose @ params["left_hand_components"] + params["left_hand_mean"][None]
    rh_full = right_hand_pose @ params["right_hand_components"] + params["right_hand_mean"][None]

    # TODO(synk): smplx also adds a learned pose_mean when flat_hand_mean=False; synthetic mean is zero here.
    full_pose = jnp.concatenate(
        [global_orient, body_pose, jaw_pose, leye_pose, reye_pose, lh_full, rh_full], axis=1)

    rot_mats = batch_rodrigues(full_pose.reshape(-1, 3)).reshape(Bn, J, 3, 3)
    pose_feature = (rot_mats[:, 1:] - jnp.eye(3, dtype=jnp.float32)).reshape(Bn, -1)  # (B, 486)
    shape_comps = jnp.concatenate([betas, expression], axis=1)                        # (B, 20)
    coeffs = jnp.concatenate([shape_comps, pose_feature], axis=1)                     # (B, 506)

    # rest joints (J_regressor @ v_shaped), done by linearity with tiny precomputed tensors
    j_template = params["J_regressor"] @ params["v_template"]                       # (J, 3)
    j_shapedirs = jnp.einsum("jv,vdk->jdk", params["J_regressor"], params["shapedirs"])
    joints_rest = j_template[None] + jnp.einsum("jdk,bk->bjd", j_shapedirs, shape_comps)

    joints_posed, A = batch_rigid_transform(rot_mats, joints_rest, params["parents"])

    if use_pallas:
        # coefficients: zero-pad K 506 -> 512, then cast to bf16 (padding stays exact zero)
        coeffs_p = jnp.pad(coeffs, ((0, 0), (0, K_PAD - K_TOTAL)))
        coeffs_p = coeffs_p.astype(jnp.bfloat16).reshape(Bn, 1, K_PAD)

        # relative transforms packed column-major: a_pack[b, c, k, j] = A[b, j, k, c],
        # with the global translation folded into the translation column (weights sum to 1).
        a_cols = jnp.transpose(A[:, :, :3, :], (0, 3, 2, 1))                        # (B,4,3,J)
        a_cols = a_cols.at[:, 3, :, :].add(transl[:, :, None])
        a_pack = jnp.pad(a_cols, ((0, 0), (0, 0), (0, 0), (0, J_PAD - J)))          # (B,4,3,Jp)

        verts_t = _lbs_pallas_call(coeffs_p, params["dirs_cmajor"], params["vt_cmajor"],
                                   a_pack, params["lbs_weights_t_pad"])             # (B,3,V)
        vertices = jnp.transpose(verts_t, (0, 2, 1))                                # (B,V,3)
    else:
        # pure-JAX reference path (original vertex-major layouts, full f32)
        shapedirs_mat = params["shapedirs"].reshape(V * 3, K_SHAPE).T               # (20, 3V)
        dirs = jnp.concatenate([shapedirs_mat, params["posedirs"]], axis=0)         # (506, 3V)
        v_posed = (params["v_template"].reshape(1, V * 3) + coeffs @ dirs).reshape(Bn, V, 3)
        T = jnp.einsum("vj,bjkl->bvkl", params["lbs_weights"], A)
        vh = jnp.concatenate([v_posed, jnp.ones((Bn, V, 1), jnp.float32)], axis=2)
        vertices = jnp.einsum("bvkl,bvl->bvk", T, vh)[..., :3] + transl[:, None, :]

    # TODO(synk): smplx vertex_joint_selector / joint_mapper extra-joint gather not reproduced.
    joints = joints_posed + transl[:, None, :]
    return {"vertices": vertices, "joints": joints}


def body_model_smplx_forward(params, betas=None, global_orient=None, transl=None,
                             body_pose=None, left_hand_pose=None, right_hand_pose=None,
                             expression=None, jaw_pose=None, leye_pose=None,
                             reye_pose=None, use_pallas=True):
    """Mirrors BodyModelSMPLX.forward: fills missing inputs with zeros at inferred batch size."""
    model_vars = [betas, global_orient, body_pose, transl, expression,
                  left_hand_pose, right_hand_pose, jaw_pose, leye_pose, reye_pose]
    batch_size = 1
    for var in model_vars:
        if var is None:
            continue
        batch_size = max(batch_size, var.shape[0])

    def z(shape):
        return jnp.zeros(shape, jnp.float32)

    if global_orient is None:
        global_orient = z((batch_size, 3))
    if body_pose is None:
        body_pose = z((batch_size, 3 * NUM_BODY_JOINTS))
    if left_hand_pose is None:
        left_hand_pose = z((batch_size, HAND_POSE_DIM))
    if right_hand_pose is None:
        right_hand_pose = z((batch_size, HAND_POSE_DIM))
    if jaw_pose is None:
        jaw_pose = z((batch_size, 3))
    if leye_pose is None:
        leye_pose = z((batch_size, 3))
    if reye_pose is None:
        reye_pose = z((batch_size, 3))
    if expression is None:
        expression = z((batch_size, NUM_EXPR))
    if betas is None:
        betas = z((batch_size, NUM_BETAS))
    if transl is None:
        transl = z((batch_size, 3))

    return smplx_lbs(params, betas, global_orient, transl, body_pose,
                     left_hand_pose, right_hand_pose, expression,
                     jaw_pose, leye_pose, reye_pose, use_pallas=use_pallas)


# ------------------------ deterministic parameter init ----------------------
def init_smplx_params(key):
    ks = jax.random.split(key, 7)
    v_template = jax.random.normal(ks[0], (V, 3), jnp.float32)
    shapedirs = 0.01 * jax.random.normal(ks[1], (V, 3, K_SHAPE), jnp.float32)
    posedirs = 0.001 * jax.random.normal(ks[2], (K_POSE, V * 3), jnp.float32)
    j_regressor = jax.nn.softmax(2.0 * jax.random.normal(ks[3], (J, V), jnp.float32), axis=1)
    lbs_weights = jax.nn.softmax(2.0 * jax.random.normal(ks[4], (V, J), jnp.float32), axis=1)
    left_hand_components = 0.1 * jax.random.normal(ks[5], (NUM_PCA, 3 * NUM_HAND_JOINTS), jnp.float32)
    right_hand_components = 0.1 * jax.random.normal(ks[6], (NUM_PCA, 3 * NUM_HAND_JOINTS), jnp.float32)
    parents = np.array([-1] + [(i - 1) // 2 for i in range(1, J)], dtype=np.int32)

    # --- pre-packed kernel layouts (free at init time) ---
    # TODO(synk): for the real mesh, zero-pad V (10475 -> 10496) here so every tile stays lane-dense.
    # Component-major blendshape directions: dirs_cmajor[d, k, v]; zero-pad K to 512 BEFORE bf16 cast.
    shapedirs_c = jnp.transpose(shapedirs, (1, 2, 0))                               # (3, 20, V)
    posedirs_c = jnp.transpose(posedirs.reshape(K_POSE, V, 3), (2, 0, 1))           # (3, 486, V)
    dirs_cmajor = jnp.concatenate([shapedirs_c, posedirs_c], axis=1)                # (3, 506, V)
    dirs_cmajor = jnp.pad(dirs_cmajor, ((0, 0), (0, K_PAD - K_TOTAL), (0, 0)))      # (3, 512, V)
    dirs_cmajor = dirs_cmajor.astype(jnp.bfloat16)                                  # bandwidth-bound: bf16
    # template kept f32 (carries O(1) values) and component-major: (3, 1, V)
    vt_cmajor = v_template.T.reshape(3, 1, V)
    # transposed + joint-padded skinning weights; kept f32 (they weight O(1) translations)
    lbs_weights_t_pad = jnp.zeros((J_PAD, V), jnp.float32).at[:J].set(lbs_weights.T)

    return {
        "v_template": v_template,
        "shapedirs": shapedirs,
        "posedirs": posedirs,
        "J_regressor": j_regressor,
        "lbs_weights": lbs_weights,
        "left_hand_components": left_hand_components,
        "right_hand_components": right_hand_components,
        "left_hand_mean": jnp.zeros((3 * NUM_HAND_JOINTS,), jnp.float32),
        "right_hand_mean": jnp.zeros((3 * NUM_HAND_JOINTS,), jnp.float32),
        "parents": parents,
        # kernel-layout derived params
        "dirs_cmajor": dirs_cmajor,
        "vt_cmajor": vt_cmajor,
        "lbs_weights_t_pad": lbs_weights_t_pad,
    }


# ----------------------------------- main ------------------------------------
if __name__ == "__main__":
    key = jax.random.PRNGKey(0)
    pk, ik = jax.random.split(key)
    params = init_smplx_params(pk)

    B = 2
    iks = jax.random.split(ik, 7)
    betas = 0.5 * jax.random.normal(iks[0], (B, NUM_BETAS), jnp.float32)
    body_pose = 0.2 * jax.random.normal(iks[1], (B, 3 * NUM_BODY_JOINTS), jnp.float32)
    global_orient = 0.2 * jax.random.normal(iks[2], (B, 3), jnp.float32)
    transl = jax.random.normal(iks[3], (B, 3), jnp.float32)
    left_hand_pose = 0.3 * jax.random.normal(iks[4], (B, HAND_POSE_DIM), jnp.float32)
    right_hand_pose = 0.3 * jax.random.normal(iks[5], (B, HAND_POSE_DIM), jnp.float32)
    expression = 0.5 * jax.random.normal(iks[6], (B, NUM_EXPR), jnp.float32)

    out = body_model_smplx_forward(
        params, betas=betas, global_orient=global_orient, transl=transl,
        body_pose=body_pose, left_hand_pose=left_hand_pose,
        right_hand_pose=right_hand_pose, expression=expression, use_pallas=True)
    jax.block_until_ready(out)

    # pure-JAX f32 reference (same math, XLA einsums instead of the fused Pallas kernel)
    ref = body_model_smplx_forward(
        params, betas=betas, global_orient=global_orient, transl=transl,
        body_pose=body_pose, left_hand_pose=left_hand_pose,
        right_hand_pose=right_hand_pose, expression=expression, use_pallas=False)
    jax.block_until_ready(ref)

    v_err = float(jnp.max(jnp.abs(out["vertices"] - ref["vertices"])))
    j_err = float(jnp.max(jnp.abs(out["joints"] - ref["joints"])))
    assert out["vertices"].shape == (B, V, 3)
    assert out["joints"].shape == (B, J, 3)
    # vertices tolerate the bf16 blendshape cast; joints are pure f32 outside the kernel
    assert v_err < 1e-2 and j_err < 1e-3, (v_err, j_err)
    print("KERNEL_OK")
</pallas_src>

<mosaic_0001>
module attributes {stable_mosaic.version = 11 : i64} {
  func.func @_lbs_kernel(%arg0: i32, %arg1: i32, %arg2: memref<1x1x512xbf16, #tpu.memory_space<vmem>>, %arg3: memref<3x512x128xbf16, #tpu.memory_space<vmem>>, %arg4: memref<3x1x128xf32, #tpu.memory_space<vmem>>, %arg5: memref<1x4x3x64xf32, #tpu.memory_space<vmem>>, %arg6: memref<64x128xf32, #tpu.memory_space<vmem>>, %arg7: memref<1x3x128xf32, #tpu.memory_space<vmem>>) attributes {dimension_semantics = [#tpu.dimension_semantics<parallel>, #tpu.dimension_semantics<parallel>], iteration_bounds = array<i64: 2, 2>, scalar_prefetch = 0 : i64, scratch_operands = 0 : i64, tpu.core_type = #tpu.core_type<tc>, window_params = [{transform_indices = @transform_0, window_bounds = array<i64: 1, 1, 512>}, {transform_indices = @transform_1, window_bounds = array<i64: 3, 512, 128>}, {transform_indices = @transform_2, window_bounds = array<i64: 3, 1, 128>}, {transform_indices = @transform_3, window_bounds = array<i64: 1, 4, 3, 64>}, {transform_indices = @transform_4, window_bounds = array<i64: 64, 128>}, {transform_indices = @transform_5, window_bounds = array<i64: 1, 3, 128>}]} {
    %c0 = arith.constant 0 : index
    %c0_0 = arith.constant 0 : index
    %c0_1 = arith.constant 0 : index
    %0 = vector.load %arg2[%c0, %c0_0, %c0_1] : memref<1x1x512xbf16, #tpu.memory_space<vmem>>, vector<1x1x512xbf16>
    %1 = vector.shape_cast %0 : vector<1x1x512xbf16> to vector<1x512xbf16>
    %c0_2 = arith.constant 0 : index
    %c0_3 = arith.constant 0 : index
    %c0_4 = arith.constant 0 : index
    %2 = vector.load %arg4[%c0_2, %c0_3, %c0_4] : memref<3x1x128xf32, #tpu.memory_space<vmem>>, vector<1x1x128xf32>
    %3 = vector.shape_cast %2 : vector<1x1x128xf32> to vector<1x128xf32>
    %c0_5 = arith.constant 0 : index
    %c0_6 = arith.constant 0 : index
    %c0_7 = arith.constant 0 : index
    %4 = vector.load %arg3[%c0_5, %c0_6, %c0_7] : memref<3x512x128xbf16, #tpu.memory_space<vmem>>, vector<1x512x128xbf16>
    %5 = vector.shape_cast %4 : vector<1x512x128xbf16> to vector<512x128xbf16>
    %cst = arith.constant dense<0.000000e+00> : vector<1x128xf32>
    %6 = tpu.matmul %1, %5, %cst {dimension_numbers = #tpu.dot_dimension_numbers<[1], [0], [0], [1], [0, 0, 1, 1], [], []>} : vector<1x512xbf16>, vector<512x128xbf16>, vector<1x128xf32> -> vector<1x128xf32>
    %7 = arith.addf %3, %6 : vector<1x128xf32>
    %c1 = arith.constant 1 : index
    %c0_8 = arith.constant 0 : index
    %c0_9 = arith.constant 0 : index
    %8 = vector.load %arg4[%c1, %c0_8, %c0_9] : memref<3x1x128xf32, #tpu.memory_space<vmem>>, vector<1x1x128xf32>
    %9 = vector.shape_cast %8 : vector<1x1x128xf32> to vector<1x128xf32>
    %c1_10 = arith.constant 1 : index
    %c0_11 = arith.constant 0 : index
    %c0_12 = arith.constant 0 : index
    %10 = vector.load %arg3[%c1_10, %c0_11, %c0_12] : memref<3x512x128xbf16, #tpu.memory_space<vmem>>, vector<1x512x128xbf16>
    %11 = vector.shape_cast %10 : vector<1x512x128xbf16> to vector<512x128xbf16>
    %cst_13 = arith.constant dense<0.000000e+00> : vector<1x128xf32>
    %12 = tpu.matmul %1, %11, %cst_13 {dimension_numbers = #tpu.dot_dimension_numbers<[1], [0], [0], [1], [0, 0, 1, 1], [], []>} : vector<1x512xbf16>, vector<512x128xbf16>, vector<1x128xf32> -> vector<1x128xf32>
    %13 = arith.addf %9, %12 : vector<1x128xf32>
    %c2 = arith.constant 2 : index
    %c0_14 = arith.constant 0 : index
    %c0_15 = arith.constant 0 : index
    %14 = vector.load %arg4[%c2, %c0_14, %c0_15] : memref<3x1x128xf32, #tpu.memory_space<vmem>>, vector<1x1x128xf32>
    %15 = vector.shape_cast %14 : vector<1x1x128xf32> to vector<1x128xf32>
    %c2_16 = arith.constant 2 : index
    %c0_17 = arith.constant 0 : index
    %c0_18 = arith.constant 0 : index
    %16 = vector.load %arg3[%c2_16, %c0_17, %c0_18] : memref<3x512x128xbf16, #tpu.memory_space<vmem>>, vector<1x512x128xbf16>
    %17 = vector.shape_cast %16 : vector<1x512x128xbf16> to vector<512x128xbf16>
    %cst_19 = arith.constant dense<0.000000e+00> : vector<1x128xf32>
    %18 = tpu.matmul %1, %17, %cst_19 {dimension_numbers = #tpu.dot_dimension_numbers<[1], [0], [0], [1], [0, 0, 1, 1], [], []>} : vector<1x512xbf16>, vector<512x128xbf16>, vector<1x128xf32> -> vector<1x128xf32>
    %19 = arith.addf %15, %18 : vector<1x128xf32>
    %c0_20 = arith.constant 0 : index
    %c0_21 = arith.constant 0 : index
    %20 = vector.load %arg6[%c0_20, %c0_21] : memref<64x128xf32, #tpu.memory_space<vmem>>, vector<64x128xf32>
    %c0_22 = arith.constant 0 : index
    %c0_23 = arith.constant 0 : index
    %c0_24 = arith.constant 0 : index
    %c0_25 = arith.constant 0 : index
    %21 = vector.load %arg5[%c0_22, %c0_23, %c0_24, %c0_25] : memref<1x4x3x64xf32, #tpu.memory_space<vmem>>, vector<1x1x3x64xf32>
    %22 = vector.shape_cast %21 : vector<1x1x3x64xf32> to vector<3x64xf32>
    %cst_26 = arith.constant dense<0.000000e+00> : vector<3x128xf32>
    %23 = tpu.matmul %22, %20, %cst_26 {dimension_numbers = #tpu.dot_dimension_numbers<[1], [0], [0], [1], [0, 0, 1, 1], [], []>} : vector<3x64xf32>, vector<64x128xf32>, vector<3x128xf32> -> vector<3x128xf32>
    %c0_27 = arith.constant 0 : index
    %c1_28 = arith.constant 1 : index
    %c0_29 = arith.constant 0 : index
    %c0_30 = arith.constant 0 : index
    %24 = vector.load %arg5[%c0_27, %c1_28, %c0_29, %c0_30] : memref<1x4x3x64xf32, #tpu.memory_space<vmem>>, vector<1x1x3x64xf32>
    %25 = vector.shape_cast %24 : vector<1x1x3x64xf32> to vector<3x64xf32>
    %cst_31 = arith.constant dense<0.000000e+00> : vector<3x128xf32>
    %26 = tpu.matmul %25, %20, %cst_31 {dimension_numbers = #tpu.dot_dimension_numbers<[1], [0], [0], [1], [0, 0, 1, 1], [], []>} : vector<3x64xf32>, vector<64x128xf32>, vector<3x128xf32> -> vector<3x128xf32>
    %c0_32 = arith.constant 0 : index
    %c2_33 = arith.constant 2 : index
    %c0_34 = arith.constant 0 : index
    %c0_35 = arith.constant 0 : index
    %27 = vector.load %arg5[%c0_32, %c2_33, %c0_34, %c0_35] : memref<1x4x3x64xf32, #tpu.memory_space<vmem>>, vector<1x1x3x64xf32>
    %28 = vector.shape_cast %27 : vector<1x1x3x64xf32> to vector<3x64xf32>
    %cst_36 = arith.constant dense<0.000000e+00> : vector<3x128xf32>
    %29 = tpu.matmul %28, %20, %cst_36 {dimension_numbers = #tpu.dot_dimension_numbers<[1], [0], [0], [1], [0, 0, 1, 1], [], []>} : vector<3x64xf32>, vector<64x128xf32>, vector<3x128xf32> -> vector<3x128xf32>
    %c0_37 = arith.constant 0 : index
    %c3 = arith.constant 3 : index
    %c0_38 = arith.constant 0 : index
    %c0_39 = arith.constant 0 : index
    %30 = vector.load %arg5[%c0_37, %c3, %c0_38, %c0_39] : memref<1x4x3x64xf32, #tpu.memory_space<vmem>>, vector<1x1x3x64xf32>
    %31 = vector.shape_cast %30 : vector<1x1x3x64xf32> to vector<3x64xf32>
    %cst_40 = arith.constant dense<0.000000e+00> : vector<3x128xf32>
    %32 = tpu.matmul %31, %20, %cst_40 {dimension_numbers = #tpu.dot_dimension_numbers<[1], [0], [0], [1], [0, 0, 1, 1], [], []>} : vector<3x64xf32>, vector<64x128xf32>, vector<3x128xf32> -> vector<3x128xf32>
    %33 = vector.broadcast %7 : vector<1x128xf32> to vector<3x128xf32>
    %34 = arith.mulf %23, %33 : vector<3x128xf32>
    %35 = vector.broadcast %13 : vector<1x128xf32> to vector<3x128xf32>
    %36 = arith.mulf %26, %35 : vector<3x128xf32>
    %37 = arith.addf %34, %36 : vector<3x128xf32>
    %38 = vector.broadcast %19 : vector<1x128xf32> to vector<3x128xf32>
    %39 = arith.mulf %29, %38 : vector<3x128xf32>
    %40 = arith.addf %37, %39 : vector<3x128xf32>
    %41 = arith.addf %40, %32 : vector<3x128xf32>
    %c0_41 = arith.constant 0 : index
    %c0_42 = arith.constant 0 : index
    %c0_43 = arith.constant 0 : index
    %42 = vector.load %arg7[%c0_41, %c0_42, %c0_43] : memref<1x3x128xf32, #tpu.memory_space<vmem>>, vector<1x3x128xf32>
    %43 = vector.shape_cast %42 : vector<1x3x128xf32> to vector<3x128xf32>
    %44 = vector.shape_cast %41 : vector<3x128xf32> to vector<1x3x128xf32>
    tpu.vector_store %arg7[%c0_41, %c0_42, %c0_43], %44 {strides = array<i32>} : memref<1x3x128xf32, #tpu.memory_space<vmem>>, vector<1x3x128xf32>,
    return
  }
  func.func @transform_0(%arg0: i32, %arg1: i32) -> (i32, i32, i32) {
    %c0_i32 = arith.constant 0 : i32
    %c0_i32_0 = arith.constant 0 : i32
    %c0_i32_1 = arith.constant 0 : i32
    return %arg1, %c0_i32, %c0_i32_0 : i32, i32, i32
  }
  func.func @transform_1(%arg0: i32, %arg1: i32) -> (i32, i32, i32) {
    %c0_i32 = arith.constant 0 : i32
    %c0_i32_0 = arith.constant 0 : i32
    %c0_i32_1 = arith.constant 0 : i32
    return %c0_i32, %c0_i32_0, %arg0 : i32, i32, i32
  }
  func.func @transform_2(%arg0: i32, %arg1: i32) -> (i32, i32, i32) {
    %c0_i32 = arith.constant 0 : i32
    %c0_i32_0 = arith.constant 0 : i32
    %c0_i32_1 = arith.constant 0 : i32
    return %c0_i32, %c0_i32_0, %arg0 : i32, i32, i32
  }
  func.func @transform_3(%arg0: i32, %arg1: i32) -> (i32, i32, i32, i32) {
    %c0_i32 = arith.constant 0 : i32
    %c0_i32_0 = arith.constant 0 : i32
    %c0_i32_1 = arith.constant 0 : i32
    %c0_i32_2 = arith.constant 0 : i32
    return %arg1, %c0_i32, %c0_i32_0, %c0_i32_1 : i32, i32, i32, i32
  }
  func.func @transform_4(%arg0: i32, %arg1: i32) -> (i32, i32) {
    %c0_i32 = arith.constant 0 : i32
    %c0_i32_0 = arith.constant 0 : i32
    return %c0_i32, %arg0 : i32, i32
  }
  func.func @transform_5(%arg0: i32, %arg1: i32) -> (i32, i32, i32) {
    %c0_i32 = arith.constant 0 : i32
    %c0_i32_0 = arith.constant 0 : i32
    return %arg1, %c0_i32, %arg0 : i32, i32, i32
  }
}

</mosaic_0001>

<llo_original>
// kernel: tpu_custom_call.1
$region0: #{tpu_custom_call.1}
  #allocation0 [shape = 'u32[]', space=smem, size = 0x4, offset = 0x4, fixed_abs, tag = 'smem constant byte address 0x4 - core index']
  #allocation1 [shape = 'u32[144,128]{1,0:T(1,128)}', space=vmem, size = 0x12000, scoped, tag = 'internal scratch']
  %s0 = inlined_call_operand.vmem [shape: bf16[2,1,512], index: 0, kind: input, shape index: {}]
  %s1 = inlined_call_operand.hbm [shape: bf16[3,512,256], index: 1, kind: input, shape index: {}]
  %s2 = inlined_call_operand.vmem [shape: f32[3,1,256], index: 2, kind: input, shape index: {}]
  %s3 = inlined_call_operand.vmem [shape: f32[2,4,3,64], index: 3, kind: input, shape index: {}]
  %s4 = inlined_call_operand.hbm [shape: f32[64,256], index: 4, kind: input, shape index: {}]
  %s5 = inlined_call_operand.vmem [shape: f32[2,3,256], index: 5, kind: output, shape index: {}]
  %s6 = sld [smem:[#allocation0]]
  $region95: #{tpu_custom_call.1} parent=0
    _
  %s8 = ssub.s32 1, %s6
  %s9 = scalar_select 0, %s8, %s6
  $region1: #{tpu_custom_call.1} parent=0
    #allocation2 [shape = 'u8[786432]{0}', space=vmem, size = 0xc0000, scoped, tag = 'input window, operand 1']
    #allocation3 [shape = 's32[2]{0}', space=sflag, size = 0x8, scoped, tag = 'scoped memory for tpu_custom_call.1']
    #allocation4 [shape = 'u8[3072]{0}', space=vmem, size = 0xc00, scoped, tag = 'input window, operand 2']
    #allocation5 [shape = 'u8[65536]{0}', space=vmem, size = 0x10000, scoped, tag = 'input window, operand 4']
    #allocation6 [shape = 's32[2]{0}', space=sflag, size = 0x8, scoped, tag = 'scoped memory for tpu_custom_call.1']
    %10 = vsyncpa [#allocation3], 0
    %s11 = scalar_lea.sflag [#allocation3], 1
    %12 = vsyncpa %s11, 0
    %13 = vsyncpa [#allocation6], 0
    %s14 = scalar_lea.sflag [#allocation6], 1
    %15 = vsyncpa %s14, 0
    loop: start=0, step=1, limit=6
    $region2: #{tpu_custom_call.1} parent=1 // loop_pre_header
      _
    $region3: #{tpu_custom_call.1} parent=1 // loop_header
      %s17 = sphi 0, %s21
      %p18 = scmp.ge.s32.totalorder %s17, 6
      %s24 = sphi 0, %s36
      %s25 = sphi 0, %s32
      %s26 = sphi 0, %s24
      %s27 = sphi 0, %s25
      %s28 = sphi 0, %s26
      %s29 = sphi 0, %s27
      %s39 = sphi 0, %s41
      %s42 = sphi 0, %s39
      %s43 = sphi 0, %s42
      %s59 = sphi 0, %s43
      %s65 = sphi 0, %s67
      %s68 = sphi 0, %s65
      %s69 = sphi 0, %s68
      %s85 = sphi 0, %s69
      %s91 = sphi 0, %s93
      %s94 = sphi 0, %s91
      %s95 = sphi 0, %s94
      %s111 = sphi 0, %s95
      %s117 = sphi 0, %s119
      %s120 = sphi 0, %s117
      %s121 = sphi 0, %s120
      %s137 = sphi 0, %s121
      %s143 = sphi 0, %s145
      %s146 = sphi 0, %s143
      %s147 = sphi 0, %s146
      %s163 = sphi 0, %s147
      %s171 = sphi 0, %s173
      %s174 = sphi 0, %s171
      %s175 = sphi 0, %s174
      %s191 = sphi 0, %s175
    $region4: #{tpu_custom_call.1} parent=1 // loop_header_branch
      %20 = sbr.rel (%p18) target = $region8
    $region5: #{tpu_custom_call.1} parent=1 // loop_body
      %s22 = ssub.s32 %s17, 1
      %s23 = ssub.s32 %s17, 2
      %s30 = sadd.s32 1, %s25
      %p31 = scmp.ge.s32.totalorder %s30, 2
      %s32 = scalar_select %p31, 0, %s30
      %s33 = sadd.s32 1, %s24
      %s34 = scalar_select %p31, %s33, %s24
      %p35 = scmp.ge.s32.totalorder %s34, 2
      %s36 = scalar_select %p35, 0, %s34
      %s37 = ssub.s32 %s25, %s32
      %p38 = scmp.eq.s32.totalorder %s37, 0
      %s40 = sadd.s32 %s39, 1
      %s41 = scalar_select %p38, %s39, %s40
      %p44 = pneg %p38
      %p45 = scmp.eq.s32.totalorder %s17, 3
      %p46 = por %p44, %p45
      %p47 = scmp.ne.s32.totalorder %s39, %s42
      %p48 = scmp.eq.s32.totalorder %s17, 0
      %p49 = por %p47, %p48
      %p50 = scmp.ne.s32.totalorder %s39, %s42
      %p51 = scmp.eq.s32.totalorder %s22, 3
      %p52 = por %p50, %p51
      %p53 = scmp.ne.s32.totalorder %s42, %s43
      %p54 = scmp.eq.s32.totalorder %s22, 0
      %p55 = por %p53, %p54
      %p56 = scmp.ne.s32.totalorder %s42, %s43
      %p57 = scmp.eq.s32.totalorder %s23, 3
      %p58 = por %p56, %p57
      %p60 = scmp.ne.s32.totalorder %s43, %s59
      %p61 = scmp.eq.s32.totalorder %s23, 0
      %p62 = por %p60, %p61
      %s63 = ssub.s32 %s24, %s36
      %p64 = scmp.eq.s32.totalorder %s63, 0
      %s66 = sadd.s32 %s65, 1
      %s67 = scalar_select %p64, %s65, %s66
      %p70 = pneg %p64
      %p71 = scmp.eq.s32.totalorder %s17, 3
      %p72 = por %p70, %p71
      %p73 = scmp.ne.s32.totalorder %s65, %s68
      %p74 = scmp.eq.s32.totalorder %s17, 0
      %p75 = por %p73, %p74
      %p76 = scmp.ne.s32.totalorder %s65, %s68
      %p77 = scmp.eq.s32.totalorder %s22, 3
      %p78 = por %p76, %p77
      %p79 = scmp.ne.s32.totalorder %s68, %s69
      %p80 = scmp.eq.s32.totalorder %s22, 0
      %p81 = por %p79, %p80
      %p82 = scmp.ne.s32.totalorder %s68, %s69
      %p83 = scmp.eq.s32.totalorder %s23, 3
      %p84 = por %p82, %p83
      %p86 = scmp.ne.s32.totalorder %s69, %s85
      %p87 = scmp.eq.s32.totalorder %s23, 0
      %p88 = por %p86, %p87
      %s89 = ssub.s32 %s24, %s36
      %p90 = scmp.eq.s32.totalorder %s89, 0
      %s92 = sadd.s32 %s91, 1
      %s93 = scalar_select %p90, %s91, %s92
      %p96 = pneg %p90
      %p97 = scmp.eq.s32.totalorder %s17, 3
      %p98 = por %p96, %p97
      %p99 = scmp.ne.s32.totalorder %s91, %s94
      %p100 = scmp.eq.s32.totalorder %s17, 0
      %p101 = por %p99, %p100
      %p102 = scmp.ne.s32.totalorder %s91, %s94
      %p103 = scmp.eq.s32.totalorder %s22, 3
      %p104 = por %p102, %p103
      %p105 = scmp.ne.s32.totalorder %s94, %s95
      %p106 = scmp.eq.s32.totalorder %s22, 0
      %p107 = por %p105, %p106
      %p108 = scmp.ne.s32.totalorder %s94, %s95
      %p109 = scmp.eq.s32.totalorder %s23, 3
      %p110 = por %p108, %p109
      %p112 = scmp.ne.s32.totalorder %s95, %s111
      %p113 = scmp.eq.s32.totalorder %s23, 0
      %p114 = por %p112, %p113
      %s115 = ssub.s32 %s25, %s32
      %p116 = scmp.eq.s32.totalorder %s115, 0
      %s118 = sadd.s32 %s117, 1
      %s119 = scalar_select %p116, %s117, %s118
      %p122 = pneg %p116
      %p123 = scmp.eq.s32.totalorder %s17, 3
      %p124 = por %p122, %p123
      %p125 = scmp.ne.s32.totalorder %s117, %s120
      %p126 = scmp.eq.s32.totalorder %s17, 0
      %p127 = por %p125, %p126
      %p128 = scmp.ne.s32.totalorder %s117, %s120
      %p129 = scmp.eq.s32.totalorder %s22, 3
      %p130 = por %p128, %p129
      %p131 = scmp.ne.s32.totalorder %s120, %s121
      %p132 = scmp.eq.s32.totalorder %s22, 0
      %p133 = por %p131, %p132
      %p134 = scmp.ne.s32.totalorder %s120, %s121
      %p135 = scmp.eq.s32.totalorder %s23, 3
      %p136 = por %p134, %p135
      %p138 = scmp.ne.s32.totalorder %s121, %s137
      %p139 = scmp.eq.s32.totalorder %s23, 0
      %p140 = por %p138, %p139
      %s141 = ssub.s32 %s24, %s36
      %p142 = scmp.eq.s32.totalorder %s141, 0
      %s144 = sadd.s32 %s143, 1
      %s145 = scalar_select %p142, %s143, %s144
      %p148 = pneg %p142
      %p149 = scmp.eq.s32.totalorder %s17, 3
      %p150 = por %p148, %p149
      %p151 = scmp.ne.s32.totalorder %s143, %s146
      %p152 = scmp.eq.s32.totalorder %s17, 0
      %p153 = por %p151, %p152
      %p154 = scmp.ne.s32.totalorder %s143, %s146
      %p155 = scmp.eq.s32.totalorder %s22, 3
      %p156 = por %p154, %p155
      %p157 = scmp.ne.s32.totalorder %s146, %s147
      %p158 = scmp.eq.s32.totalorder %s22, 0
      %p159 = por %p157, %p158
      %p160 = scmp.ne.s32.totalorder %s146, %s147
      %p161 = scmp.eq.s32.totalorder %s23, 3
      %p162 = por %p160, %p161
      %p164 = scmp.ne.s32.totalorder %s147, %s163
      %p165 = scmp.eq.s32.totalorder %s23, 0
      %p166 = por %p164, %p165
      %s167 = ssub.s32 %s25, %s32
      %s168 = ssub.s32 %s24, %s36
      %s169 = sor.u32 %s167, %s168
      %p170 = scmp.eq.s32.totalorder %s169, 0
      %s172 = sadd.s32 %s171, 1
      %s173 = scalar_select %p170, %s171, %s172
      %p176 = pneg %p170
      %p177 = scmp.eq.s32.totalorder %s17, 3
      %p178 = por %p176, %p177
      %p179 = scmp.ne.s32.totalorder %s171, %s174
      %p180 = scmp.eq.s32.totalorder %s17, 0
      %p181 = por %p179, %p180
      %p182 = scmp.ne.s32.totalorder %s171, %s174
      %p183 = scmp.eq.s32.totalorder %s22, 3
      %p184 = por %p182, %p183
      %p185 = scmp.ne.s32.totalorder %s174, %s175
      %p186 = scmp.eq.s32.totalorder %s22, 0
      %p187 = por %p185, %p186
      %p188 = scmp.ne.s32.totalorder %s174, %s175
      %p189 = scmp.eq.s32.totalorder %s23, 3
      %p190 = por %p188, %p189
      %p192 = scmp.ne.s32.totalorder %s175, %s191
      %p193 = scmp.eq.s32.totalorder %s23, 0
      %p194 = por %p192, %p193
      %p195 = scmp.le.s32.totalorder 1, %s17
      %p196 = scmp.lt.s32.totalorder %s17, 5
      %p197 = pnand %p195, %p196
      %p198 = pneg %p197
      // Predicated region
      $region9: #{tpu_custom_call.1} parent=5 // pred_check
        _
      $region10: #{tpu_custom_call.1} parent=5 // pred_check_branch
        %200 = sbr.rel (%p197) target = $region12
      $region11: #{tpu_custom_call.1} parent=5 // pred_region
        %s201 = ssub.s32 %s17, 1
      $region12: #{tpu_custom_call.1} parent=5 // pred_fallthru
        _
      %p202 = scmp.lt.s32.totalorder %s17, 4
      // Predicated region
      $region13: #{tpu_custom_call.1} parent=5 // pred_check
        %p203 = pneg %p202
      $region14: #{tpu_custom_call.1} parent=5 // pred_check_branch
        %205 = sbr.rel (%p203) target = $region16
      $region15: #{tpu_custom_call.1} parent=5 // pred_region
        // Predicated region
        $region17: #{tpu_custom_call.1} parent=15 // pred_check
          %p206 = pneg %p49
        $region18: #{tpu_custom_call.1} parent=15 // pred_check_branch
          %208 = sbr.rel (%p206) target = $region20
        $region19: #{tpu_custom_call.1} parent=15 // pred_region
          %p209 = scmp.lt.s32.totalorder %s25, 1
          %s210 = scalar_select %p209, %s25, 1
          %s211 = smul.addr %s210, 4
          %s212 = scalar_lea.vmem %s0, %s211
        $region20: #{tpu_custom_call.1} parent=15 // pred_fallthru
          _
        // Predicated region
        $region21: #{tpu_custom_call.1} parent=15 // pred_check
          %p213 = pneg %p75
        $region22: #{tpu_custom_call.1} parent=15 // pred_check_branch
          %215 = sbr.rel (%p213) target = $region24
        $region23: #{tpu_custom_call.1} parent=15 // pred_region
          %s216 = sand.u32 %s65, 1
          %s217 = scalar_lea.sflag [#allocation3], %s216
          %s218 = sand.u32 %s65, 1
          %s219 = smul.addr %s218, 768
          %s220 = scalar_lea.vmem [#allocation2], %s219
          %s222 = ssub.s32 12288, 12288
          %223 = vsyncadd %s217, %s222
          %s224 = smul.addr %s24, 64
          %s225 = scalar_lea.hbm %s1, %s224
          %s226 = sshll.u32 %s220, 4
          %s227 = int_to_ptr.vmem [resolvable:$true] %s226
          %232 = dma.hbm_to_vmem [thread:$0]  %s225, 12288, %s227, %s217, 128, 64, 4
        $region24: #{tpu_custom_call.1} parent=15 // pred_fallthru
          _
        // Predicated region
        $region25: #{tpu_custom_call.1} parent=15 // pred_check
          %p233 = pneg %p101
        $region26: #{tpu_custom_call.1} parent=15 // pred_check_branch
          %235 = sbr.rel (%p233) target = $region28
        $region27: #{tpu_custom_call.1} parent=15 // pred_region
          %s236 = sand.u32 %s91, 1
          %s237 = sand.u32 %s91, 1
          %s238 = smul.addr %s237, 3
          %s239 = scalar_lea.vmem [#allocation4], %s238
          %s240 = scalar_lea.vmem %s2, %s24
          // Predicated region
          $region29: #{tpu_custom_call.1} parent=27 // pred_check
            _
          $region30: #{tpu_custom_call.1} parent=27 // pred_check_branch
            %242 = sbr.rel (0) target = $region32
          $region31: #{tpu_custom_call.1} parent=27 // pred_region
            // Predicated region
            $region33: #{tpu_custom_call.1} parent=31 // pred_check
              _
            $region34: #{tpu_custom_call.1} parent=31 // pred_check_branch
              %244 = sbr.rel target = $region36
            $region35: #{tpu_custom_call.1} parent=31 // pred_region
              // Predicated region
              $region48: #{tpu_custom_call.1} parent=35 // pred_check
                _
              $region49: #{tpu_custom_call.1} parent=35 // pred_check_branch
                %264 = sbr.rel (0) target = $region51
              $region50: #{tpu_custom_call.1} parent=35 // pred_region
                %s266 = ssub.s32 2, 1
                loop: start=0, step=1, limit=1
                $region52: #{tpu_custom_call.1} parent=50 // loop_pre_header
                  _
                $region53: #{tpu_custom_call.1} parent=50 // loop_header
                  %s268 = sphi 0, %s272
                  %p269 = scmp.ge.s32.totalorder %s268, 1
                  %s273 = sphi %s240, %s240
                  %s274 = sphi %s239, %s239
                $region54: #{tpu_custom_call.1} parent=50 // loop_header_branch
                  %271 = sbr.rel (%p269) target = $region58
                $region55: #{tpu_custom_call.1} parent=50 // loop_body
                  %v275 = vld [vmem:[%s273] sm:%s266]
                  %276 = vst [vmem:[%s274] sm:%s266] %v275
                  %v277 = vld [vmem:[%s273 + $0x2] sm:%s266]
                  %278 = vst [vmem:[%s274 + $0x1] sm:%s266] %v277
                  %v279 = vld [vmem:[%s273 + $0x4] sm:%s266]
                  %280 = vst [vmem:[%s274 + $0x2] sm:%s266] %v279
                $region56: #{tpu_custom_call.1} parent=50 // loop_footer
                  %s272 = sadd.s32 1, %s268
                $region57: #{tpu_custom_call.1} parent=50 // loop_footer_branch
                  %267 = sbr.rel target = $region53
                $region58: #{tpu_custom_call.1} parent=50 // loop_exit
                  _
              $region51: #{tpu_custom_call.1} parent=35 // pred_fallthru
                _
            $region36: #{tpu_custom_call.1} parent=31 // pred_fallthru
              _
            // Predicated region
            $region37: #{tpu_custom_call.1} parent=31 // pred_check
              _
            $region38: #{tpu_custom_call.1} parent=31 // pred_check_branch
              %246 = sbr.rel (0) target = $region40
            $region39: #{tpu_custom_call.1} parent=31 // pred_region
              %s248 = ssub.s32 2, 1
              loop: start=0, step=1, limit=1
              $region41: #{tpu_custom_call.1} parent=39 // loop_pre_header
                _
              $region42: #{tpu_custom_call.1} parent=39 // loop_header
                %s250 = sphi 0, %s254
                %p251 = scmp.ge.s32.totalorder %s250, 1
                %s255 = sphi %s240, %s240
                %s256 = sphi %s239, %s239
              $region43: #{tpu_custom_call.1} parent=39 // loop_header_branch
                %253 = sbr.rel (%p251) target = $region47
              $region44: #{tpu_custom_call.1} parent=39 // loop_body
                %v257 = vld [vmem:[%s255] sm:%s248]
                %258 = vst [vmem:[%s256] sm:%s248] %v257
                %v259 = vld [vmem:[%s255 + $0x2] sm:%s248]
                %260 = vst [vmem:[%s256 + $0x1] sm:%s248] %v259
                %v261 = vld [vmem:[%s255 + $0x4] sm:%s248]
                %262 = vst [vmem:[%s256 + $0x2] sm:%s248] %v261
              $region45: #{tpu_custom_call.1} parent=39 // loop_footer
                %s254 = sadd.s32 1, %s250
              $region46: #{tpu_custom_call.1} parent=39 // loop_footer_branch
                %249 = sbr.rel target = $region42
              $region47: #{tpu_custom_call.1} parent=39 // loop_exit
                _
            $region40: #{tpu_custom_call.1} parent=31 // pred_fallthru
              _
          $region32: #{tpu_custom_call.1} parent=27 // pred_fallthru
            _
          %281 = vnop
        $region28: #{tpu_custom_call.1} parent=15 // pred_fallthru
          _
        // Predicated region
        $region59: #{tpu_custom_call.1} parent=15 // pred_check
          %p282 = pneg %p127
        $region60: #{tpu_custom_call.1} parent=15 // pred_check_branch
          %284 = sbr.rel (%p282) target = $region62
        $region61: #{tpu_custom_call.1} parent=15 // pred_region
          %p285 = scmp.lt.s32.totalorder %s25, 1
          %s286 = scalar_select %p285, %s25, 1
          %s287 = smul.addr %s286, 4
          %s288 = smul.addr %s287, 4
          %s289 = scalar_lea.vmem %s3, %s288
        $region62: #{tpu_custom_call.1} parent=15 // pred_fallthru
          _
        // Predicated region
        $region63: #{tpu_custom_call.1} parent=15 // pred_check
          %p290 = pneg %p153
        $region64: #{tpu_custom_call.1} parent=15 // pred_check_branch
          %292 = sbr.rel (%p290) target = $region66
        $region65: #{tpu_custom_call.1} parent=15 // pred_region
          %s293 = sand.u32 %s143, 1
          %s294 = scalar_lea.sflag [#allocation6], %s293
          %s295 = sand.u32 %s143, 1
          %s296 = smul.addr %s295, 64
          %s297 = scalar_lea.vmem [#allocation5], %s296
          %s299 = ssub.s32 1024, 1024
          %300 = vsyncadd %s294, %s299
          %s301 = smul.addr %s24, 128
          %s302 = scalar_lea.hbm %s4, %s301
          %s303 = sshll.u32 %s297, 4
          %s304 = int_to_ptr.vmem [resolvable:$true] %s303
          %309 = dma.hbm_to_vmem [thread:$0]  %s302, 1024, %s304, %s294, 256, 128, 8
        $region66: #{tpu_custom_call.1} parent=15 // pred_fallthru
          _
      $region16: #{tpu_custom_call.1} parent=5 // pred_fallthru
        _
      %p310 = scmp.le.s32.totalorder 1, %s17
      %p311 = scmp.lt.s32.totalorder %s17, 5
      %p312 = pnand %p310, %p311
      %p313 = pneg %p312
      // Predicated region
      $region67: #{tpu_custom_call.1} parent=5 // pred_check
        _
      $region68: #{tpu_custom_call.1} parent=5 // pred_check_branch
        %315 = sbr.rel (%p312) target = $region70
      $region69: #{tpu_custom_call.1} parent=5 // pred_region
        %s316 = ssub.s32 %s17, 1
        %s317 = sand.u32 %s68, 1
        %s318 = scalar_lea.sflag [#allocation3], %s317
        %s319 = sand.u32 %s68, 1
        %s320 = smul.addr %s319, 768
        %s321 = scalar_lea.vmem [#allocation2], %s320
        // Predicated region
        $region71: #{tpu_custom_call.1} parent=69 // pred_check
          %p322 = pneg %p81
        $region72: #{tpu_custom_call.1} parent=69 // pred_check_branch
          %324 = sbr.rel (%p322) target = $region74
        $region73: #{tpu_custom_call.1} parent=69 // pred_region
          %325 = dma.done %s318, 12288
        $region74: #{tpu_custom_call.1} parent=69 // pred_fallthru
          _
        %s326 = sand.u32 %s94, 1
        %s327 = sand.u32 %s94, 1
        %s328 = smul.addr %s327, 3
        %s329 = scalar_lea.vmem [#allocation4], %s328
        // Predicated region
        $region75: #{tpu_custom_call.1} parent=69 // pred_check
          %p330 = pneg %p107
        $region76: #{tpu_custom_call.1} parent=69 // pred_check_branch
          %332 = sbr.rel (%p330) target = $region78
        $region77: #{tpu_custom_call.1} parent=69 // pred_region
          _
        $region78: #{tpu_custom_call.1} parent=69 // pred_fallthru
          _
        %s333 = sand.u32 %s146, 1
        %s334 = scalar_lea.sflag [#allocation6], %s333
        %s335 = sand.u32 %s146, 1
        %s336 = smul.addr %s335, 64
        %s337 = scalar_lea.vmem [#allocation5], %s336
        // Predicated region
        $region79: #{tpu_custom_call.1} parent=69 // pred_check
          %p338 = pneg %p159
        $region80: #{tpu_custom_call.1} parent=69 // pred_check_branch
          %340 = sbr.rel (%p338) target = $region82
        $region81: #{tpu_custom_call.1} parent=69 // pred_region
          %341 = dma.done %s334, 1024
        $region82: #{tpu_custom_call.1} parent=69 // pred_fallthru
          _
        %p342 = scmp.lt.s32.totalorder %s27, 1
        %s343 = scalar_select %p342, %s27, 1
        %s344 = smul.addr %s343, 4
        %s345 = scalar_lea.vmem %s0, %s344
        %p346 = pneg %p55
        %p347 = pneg %p52
        %s348 = sand.u32 %s68, 1
        %s349 = scalar_lea.sflag [#allocation3], %s348
        %s350 = sand.u32 %s68, 1
        %s351 = smul.addr %s350, 768
        %s352 = scalar_lea.vmem [#allocation2], %s351
        %p353 = pneg %p81
        %p354 = pneg %p78
        %s355 = sand.u32 %s94, 1
        %s356 = sand.u32 %s94, 1
        %s357 = smul.addr %s356, 3
        %s358 = scalar_lea.vmem [#allocation4], %s357
        %p359 = pneg %p107
        %p360 = pneg %p104
        %p361 = scmp.lt.s32.totalorder %s27, 1
        %s362 = scalar_select %p361, %s27, 1
        %s363 = smul.addr %s362, 4
        %s364 = smul.addr %s363, 4
        %s365 = scalar_lea.vmem %s3, %s364
        %p366 = pneg %p133
        %p367 = pneg %p130
        %s368 = sand.u32 %s146, 1
        %s369 = scalar_lea.sflag [#allocation6], %s368
        %s370 = sand.u32 %s146, 1
        %s371 = smul.addr %s370, 64
        %s372 = scalar_lea.vmem [#allocation5], %s371
        %p373 = pneg %p159
        %p374 = pneg %p156
        %p375 = pneg %p187
        %p376 = pneg %p184
        %p377 = scmp.lt.s32.totalorder %s27, 1
        %s378 = scalar_select %p377, %s27, 1
        %p379 = scmp.lt.s32.totalorder %s26, 1
        %s380 = scalar_select %p379, %s26, 1
        %s381 = smul.addr %s378, 2
        %s382 = sadd.s32 %s380, %s381
        %s383 = smul.addr %s382, 4
        %s384 = scalar_lea.vmem %s5, %s383
        %p385 = scmp.lt.s32.totalorder %s27, 1
        %s386 = scalar_select %p385, %s27, 1
        %s387 = smul.addr %s386, 4
        %s388 = scalar_lea.vmem %s0, %s387
        %p389 = scmp.lt.s32.totalorder %s27, 1
        %s390 = scalar_select %p389, %s27, 1
        %s391 = smul.addr %s390, 4
        %s392 = smul.addr %s391, 4
        %s393 = scalar_lea.vmem %s3, %s392
        %p394 = scmp.lt.s32.totalorder %s27, 1
        %s395 = scalar_select %p394, %s27, 1
        %p396 = scmp.lt.s32.totalorder %s26, 1
        %s397 = scalar_select %p396, %s26, 1
        %s398 = smul.addr %s395, 2
        %s399 = sadd.s32 %s397, %s398
        %s400 = smul.addr %s399, 4
        %s401 = scalar_lea.vmem %s5, %s400
        %v403 = vld [vmem:[%s388] sm:$0xf]
        %v404 = vld [vmem:[%s329] sm:$0x1]
        %v405 = vld [vmem:[%s321] sm:$0xf]
        %v406 = vld [vmem:[%s321 + $0x4] sm:$0xf]
        %v407 = vld [vmem:[%s321 + $0x8] sm:$0xf]
        %v408 = vld [vmem:[%s321 + $0xc] sm:$0xf]
        %v409 = vld [vmem:[%s321 + $0x10] sm:$0xf]
        %v410 = vld [vmem:[%s321 + $0x14] sm:$0xf]
        %v411 = vld [vmem:[%s321 + $0x18] sm:$0xf]
        %v412 = vld [vmem:[%s321 + $0x1c] sm:$0xf]
        %v413 = vld [vmem:[%s321 + $0x20] sm:$0xf]
        %v414 = vld [vmem:[%s321 + $0x24] sm:$0xf]
        %v415 = vld [vmem:[%s321 + $0x28] sm:$0xf]
        %v416 = vld [vmem:[%s321 + $0x2c] sm:$0xf]
        %v417 = vld [vmem:[%s321 + $0x30] sm:$0xf]
        %v418 = vld [vmem:[%s321 + $0x34] sm:$0xf]
        %v419 = vld [vmem:[%s321 + $0x38] sm:$0xf]
        %v420 = vld [vmem:[%s321 + $0x3c] sm:$0xf]
        %v421 = vld [vmem:[%s321 + $0x40] sm:$0xf]
        %v422 = vld [vmem:[%s321 + $0x44] sm:$0xf]
        %v423 = vld [vmem:[%s321 + $0x48] sm:$0xf]
        %v424 = vld [vmem:[%s321 + $0x4c] sm:$0xf]
        %v425 = vld [vmem:[%s321 + $0x50] sm:$0xf]
        %v426 = vld [vmem:[%s321 + $0x54] sm:$0xf]
        %v427 = vld [vmem:[%s321 + $0x58] sm:$0xf]
        %v428 = vld [vmem:[%s321 + $0x5c] sm:$0xf]
        %v429 = vld [vmem:[%s321 + $0x60] sm:$0xf]
        %v430 = vld [vmem:[%s321 + $0x64] sm:$0xf]
        %v431 = vld [vmem:[%s321 + $0x68] sm:$0xf]
        %v432 = vld [vmem:[%s321 + $0x6c] sm:$0xf]
        %v433 = vld [vmem:[%s321 + $0x70] sm:$0xf]
        %v434 = vld [vmem:[%s321 + $0x74] sm:$0xf]
        %v435 = vld [vmem:[%s321 + $0x78] sm:$0xf]
        %v436 = vld [vmem:[%s321 + $0x7c] sm:$0xf]
        %v437 = vld [vmem:[%s321 + $0x80] sm:$0xf]
        %v438 = vld [vmem:[%s321 + $0x84] sm:$0xf]
        %v439 = vld [vmem:[%s321 + $0x88] sm:$0xf]
        %v440 = vld [vmem:[%s321 + $0x8c] sm:$0xf]
        %v441 = vld [vmem:[%s321 + $0x90] sm:$0xf]
        %v442 = vld [vmem:[%s321 + $0x94] sm:$0xf]
        %v443 = vld [vmem:[%s321 + $0x98] sm:$0xf]
        %v444 = vld [vmem:[%s321 + $0x9c] sm:$0xf]
        %v445 = vld [vmem:[%s321 + $0xa0] sm:$0xf]
        %v446 = vld [vmem:[%s321 + $0xa4] sm:$0xf]
        %v447 = vld [vmem:[%s321 + $0xa8] sm:$0xf]
        %v448 = vld [vmem:[%s321 + $0xac] sm:$0xf]
        %v449 = vld [vmem:[%s321 + $0xb0] sm:$0xf]
        %v450 = vld [vmem:[%s321 + $0xb4] sm:$0xf]
        %v451 = vld [vmem:[%s321 + $0xb8] sm:$0xf]
        %v452 = vld [vmem:[%s321 + $0xbc] sm:$0xf]
        %v453 = vld [vmem:[%s321 + $0xc0] sm:$0xf]
        %v454 = vld [vmem:[%s321 + $0xc4] sm:$0xf]
        %v455 = vld [vmem:[%s321 + $0xc8] sm:$0xf]
        %v456 = vld [vmem:[%s321 + $0xcc] sm:$0xf]
        %v457 = vld [vmem:[%s321 + $0xd0] sm:$0xf]
        %v458 = vld [vmem:[%s321 + $0xd4] sm:$0xf]
        %v459 = vld [vmem:[%s321 + $0xd8] sm:$0xf]
        %v460 = vld [vmem:[%s321 + $0xdc] sm:$0xf]
        %v461 = vld [vmem:[%s321 + $0xe0] sm:$0xf]
        %v462 = vld [vmem:[%s321 + $0xe4] sm:$0xf]
        %v463 = vld [vmem:[%s321 + $0xe8] sm:$0xf]
        %v464 = vld [vmem:[%s321 + $0xec] sm:$0xf]
        %v465 = vld [vmem:[%s321 + $0xf0] sm:$0xf]
        %v466 = vld [vmem:[%s321 + $0xf4] sm:$0xf]
        %v467 = vld [vmem:[%s321 + $0xf8] sm:$0xf]
        %v468 = vld [vmem:[%s321 + $0xfc] sm:$0xf]
        %v471 = vunpack.c.l.s4 1966171168
        %v472 = vunpack.c.0.s8 %v471
        %v473 = vlaneseq
        %v474 = vshrl.u32 %v473, 7
        %v475 = vsub.s32 %v472, %v474
        %v476 = vrot.slane %v403, %v475
        %v477 = vcombine.high %v476, %v476
        %v479 = vunpack.c.l.s4 1966171168
        %v480 = vunpack.c.0.s8 %v479
        %v481 = vlaneseq
        %v482 = vshrl.u32 %v481, 7
        %v483 = vsub.s32 %v480, %v482
        %v484 = vrot.slane %v476, %v483
        %v486 = vunpack.c.l.s4 1966171168
        %v487 = vunpack.c.0.s8 %v486
        %v488 = vlaneseq
        %v489 = vshrl.u32 %v488, 7
        %v490 = vsub.s32 %v487, %v489
        %v491 = vrot.slane %v477, %v490
        %v492 = vcombine.high %v484, %v484
        %v493 = vcombine.high %v491, %v491
        %v562 = vunpack.c.l.b16 %v405
        %v563 = vunpack.c.l.b16 %v406
        %v564 = vunpack.c.l.b16 %v407
        %v565 = vunpack.c.l.b16 %v408
        %v566 = vunpack.c.l.b16 %v409
        %v567 = vunpack.c.l.b16 %v410
        %v568 = vunpack.c.l.b16 %v411
        %v569 = vunpack.c.l.b16 %v412
        %v570 = vunpack.c.l.b16 %v413
        %v571 = vunpack.c.l.b16 %v414
        %v572 = vunpack.c.l.b16 %v415
        %v573 = vunpack.c.l.b16 %v416
        %v574 = vunpack.c.l.b16 %v417
        %v575 = vunpack.c.l.b16 %v418
        %v576 = vunpack.c.l.b16 %v419
        %v577 = vunpack.c.l.b16 %v420
        %v578 = vunpack.c.l.b16 %v421
        %v579 = vunpack.c.l.b16 %v422
        %v580 = vunpack.c.l.b16 %v423
        %v581 = vunpack.c.l.b16 %v424
        %v582 = vunpack.c.l.b16 %v425
        %v583 = vunpack.c.l.b16 %v426
        %v584 = vunpack.c.l.b16 %v427
        %v585 = vunpack.c.l.b16 %v428
        %v586 = vunpack.c.l.b16 %v429
        %v587 = vunpack.c.l.b16 %v430
        %v588 = vunpack.c.l.b16 %v431
        %v589 = vunpack.c.l.b16 %v432
        %v590 = vunpack.c.l.b16 %v433
        %v591 = vunpack.c.l.b16 %v434
        %v592 = vunpack.c.l.b16 %v435
        %v593 = vunpack.c.l.b16 %v436
        %v594 = vunpack.c.l.b16 %v437
        %v595 = vunpack.c.l.b16 %v438
        %v596 = vunpack.c.l.b16 %v439
        %v597 = vunpack.c.l.b16 %v440
        %v598 = vunpack.c.l.b16 %v441
        %v599 = vunpack.c.l.b16 %v442
        %v600 = vunpack.c.l.b16 %v443
        %v601 = vunpack.c.l.b16 %v444
        %v602 = vunpack.c.l.b16 %v445
        %v603 = vunpack.c.l.b16 %v446
        %v604 = vunpack.c.l.b16 %v447
        %v605 = vunpack.c.l.b16 %v448
        %v606 = vunpack.c.l.b16 %v449
        %v607 = vunpack.c.l.b16 %v450
        %v608 = vunpack.c.l.b16 %v451
        %v609 = vunpack.c.l.b16 %v452
        %v610 = vunpack.c.l.b16 %v453
        %v611 = vunpack.c.l.b16 %v454
        %v612 = vunpack.c.l.b16 %v455
        %v613 = vunpack.c.l.b16 %v456
        %v614 = vunpack.c.l.b16 %v457
        %v615 = vunpack.c.l.b16 %v458
        %v616 = vunpack.c.l.b16 %v459
        %v617 = vunpack.c.l.b16 %v460
        %v618 = vunpack.c.l.b16 %v461
        %v619 = vunpack.c.l.b16 %v462
        %v620 = vunpack.c.l.b16 %v463
        %v621 = vunpack.c.l.b16 %v464
        %v622 = vunpack.c.l.b16 %v465
        %v623 = vunpack.c.l.b16 %v466
        %v624 = vunpack.c.l.b16 %v467
        %v625 = vunpack.c.l.b16 %v468
        %v626 = vpack.c.b16 %v563, %v562
        %v627 = vpack.c.b16 %v565, %v564
        %v628 = vpack.c.b16 %v567, %v566
        %v629 = vpack.c.b16 %v569, %v568
        %v630 = vpack.c.b16 %v571, %v570
        %v631 = vpack.c.b16 %v573, %v572
        %v632 = vpack.c.b16 %v575, %v574
        %v633 = vpack.c.b16 %v577, %v576
        %v634 = vpack.c.b16 %v579, %v578
        %v635 = vpack.c.b16 %v581, %v580
        %v636 = vpack.c.b16 %v583, %v582
        %v637 = vpack.c.b16 %v585, %v584
        %v638 = vpack.c.b16 %v587, %v586
        %v639 = vpack.c.b16 %v589, %v588
        %v640 = vpack.c.b16 %v591, %v590
        %v641 = vpack.c.b16 %v593, %v592
        %v642 = vpack.c.b16 %v595, %v594
        %v643 = vpack.c.b16 %v597, %v596
        %v644 = vpack.c.b16 %v599, %v598
        %v645 = vpack.c.b16 %v601, %v600
        %v646 = vpack.c.b16 %v603, %v602
        %v647 = vpack.c.b16 %v605, %v604
        %v648 = vpack.c.b16 %v607, %v606
        %v649 = vpack.c.b16 %v609, %v608
        %v650 = vpack.c.b16 %v611, %v610
        %v651 = vpack.c.b16 %v613, %v612
        %v652 = vpack.c.b16 %v615, %v614
        %v653 = vpack.c.b16 %v617, %v616
        %v654 = vpack.c.b16 %v619, %v618
        %v655 = vpack.c.b16 %v621, %v620
        %v656 = vpack.c.b16 %v623, %v622
        %v657 = vpack.c.b16 %v625, %v624
        %690 = vmatprep.subr.bf16.mxu0 0
        %691 = vmatpush1.bf16.msra.mxu0 %v633
        %692 = vmatprep.subr.bf16.mxu0 0
        %693 = vmatpush1.bf16.msra.mxu0 %v632
        %694 = vmatprep.subr.bf16.mxu0 0
        %695 = vmatpush1.bf16.msra.mxu0 %v631
        %696 = vmatprep.subr.bf16.mxu0 0
        %697 = vmatpush1.bf16.msra.mxu0 %v630
        %698 = vmatprep.subr.bf16.mxu0 0
        %699 = vmatpush1.bf16.msra.mxu0 %v629
        %700 = vmatprep.subr.bf16.mxu0 0
        %701 = vmatpush1.bf16.msra.mxu0 %v628
        %702 = vmatprep.subr.bf16.mxu0 0
        %703 = vmatpush1.bf16.msra.mxu0 %v627
        %704 = vmatprep.subr.bf16.mxu0 0
        %705 = vmatpush1.bf16.msra.mxu0 %v626
        %706 = vmatprep.subr.bf16.mxu0 0
        %707 = vmatpush2.bf16.msra.mxu0 %v641
        %708 = vmatprep.subr.bf16.mxu0 0
        %709 = vmatpush2.bf16.msra.mxu0 %v640
        %710 = vmatprep.subr.bf16.mxu0 0
        %711 = vmatpush2.bf16.msra.mxu0 %v639
        %712 = vmatprep.subr.bf16.mxu0 0
        %713 = vmatpush2.bf16.msra.mxu0 %v638
        %714 = vmatprep.subr.bf16.mxu0 0
        %715 = vmatpush2.bf16.msra.mxu0 %v637
        %716 = vmatprep.subr.bf16.mxu0 0
        %717 = vmatpush2.bf16.msra.mxu0 %v636
        %718 = vmatprep.subr.bf16.mxu0 0
        %719 = vmatpush2.bf16.msra.mxu0 %v635
        %720 = vmatprep.subr.bf16.mxu0 0
        %721 = vmatpush2.bf16.msra.mxu0 %v634
        %722 = vmatprep.mubr.bf16.mxu0 %v491
        %723 = vmatmul.mubr.bf16.gmra.mxu0 %v484
        %v724 = vpop.f32.mrf.mxu0
        %v725 = vadd.f32 0.0, %v724
        %v726 = vpop.f32.mrf.mxu0
        %v727 = vpop.f32.mrf.mxu0
        %v728 = vpop.f32.mrf.mxu0
        %729 = vdwg.mxu0
        %730 = vmatprep.subr.bf16.mxu0 0
        %731 = vmatpush1.bf16.msra.mxu0 %v649
        %732 = vmatprep.subr.bf16.mxu0 0
        %733 = vmatpush1.bf16.msra.mxu0 %v648
        %734 = vmatprep.subr.bf16.mxu0 0
        %735 = vmatpush1.bf16.msra.mxu0 %v647
        %736 = vmatprep.subr.bf16.mxu0 0
        %737 = vmatpush1.bf16.msra.mxu0 %v646
        %738 = vmatprep.subr.bf16.mxu0 0
        %739 = vmatpush1.bf16.msra.mxu0 %v645
        %740 = vmatprep.subr.bf16.mxu0 0
        %741 = vmatpush1.bf16.msra.mxu0 %v644
        %742 = vmatprep.subr.bf16.mxu0 0
        %743 = vmatpush1.bf16.msra.mxu0 %v643
        %744 = vmatprep.subr.bf16.mxu0 0
        %745 = vmatpush1.bf16.msra.mxu0 %v642
        %746 = vmatprep.subr.bf16.mxu0 0
        %747 = vmatpush2.bf16.msra.mxu0 %v657
        %748 = vmatprep.subr.bf16.mxu0 0
        %749 = vmatpush2.bf16.msra.mxu0 %v656
        %750 = vmatprep.subr.bf16.mxu0 0
        %751 = vmatpush2.bf16.msra.mxu0 %v655
        %752 = vmatprep.subr.bf16.mxu0 0
        %753 = vmatpush2.bf16.msra.mxu0 %v654
        %754 = vmatprep.subr.bf16.mxu0 0
        %755 = vmatpush2.bf16.msra.mxu0 %v653
        %756 = vmatprep.subr.bf16.mxu0 0
        %757 = vmatpush2.bf16.msra.mxu0 %v652
        %758 = vmatprep.subr.bf16.mxu0 0
        %759 = vmatpush2.bf16.msra.mxu0 %v651
        %760 = vmatprep.subr.bf16.mxu0 0
        %761 = vmatpush2.bf16.msra.mxu0 %v650
        %762 = vmatprep.mubr.bf16.mxu0 %v493
        %763 = vmatmul.mubr.bf16.gmra.mxu0 %v492
        %v764 = vpop.f32.mrf.mxu0
        %v765 = vadd.f32 %v725, %v764
        %v766 = vpop.f32.mrf.mxu0
        %v767 = vpop.f32.mrf.mxu0
        %v768 = vpop.f32.mrf.mxu0
        %769 = vdwg.mxu0
        %v770 = vadd.f32 %v404, %v765
        %s771 = scalar_lea.vmem %s329, 1 [#allocation4]
        %v772 = vld [vmem:[%s771] sm:$0x1]
        %s773 = scalar_lea.vmem %s321, 256 [#allocation2]
        %v774 = vld [vmem:[%s773] sm:$0xf]
        %v775 = vld [vmem:[%s773 + $0x4] sm:$0xf]
        %v776 = vld [vmem:[%s773 + $0x8] sm:$0xf]
        %v777 = vld [vmem:[%s773 + $0xc] sm:$0xf]
        %v778 = vld [vmem:[%s773 + $0x10] sm:$0xf]
        %v779 = vld [vmem:[%s773 + $0x14] sm:$0xf]
        %v780 = vld [vmem:[%s773 + $0x18] sm:$0xf]
        %v781 = vld [vmem:[%s773 + $0x1c] sm:$0xf]
        %v782 = vld [vmem:[%s773 + $0x20] sm:$0xf]
        %v783 = vld [vmem:[%s773 + $0x24] sm:$0xf]
        %v784 = vld [vmem:[%s773 + $0x28] sm:$0xf]
        %v785 = vld [vmem:[%s773 + $0x2c] sm:$0xf]
        %v786 = vld [vmem:[%s773 + $0x30] sm:$0xf]
        %v787 = vld [vmem:[%s773 + $0x34] sm:$0xf]
        %v788 = vld [vmem:[%s773 + $0x38] sm:$0xf]
        %v789 = vld [vmem:[%s773 + $0x3c] sm:$0xf]
        %v790 = vld [vmem:[%s773 + $0x40] sm:$0xf]
        %v791 = vld [vmem:[%s773 + $0x44] sm:$0xf]
        %v792 = vld [vmem:[%s773 + $0x48] sm:$0xf]
        %v793 = vld [vmem:[%s773 + $0x4c] sm:$0xf]
        %v794 = vld [vmem:[%s773 + $0x50] sm:$0xf]
        %v795 = vld [vmem:[%s773 + $0x54] sm:$0xf]
        %v796 = vld [vmem:[%s773 + $0x58] sm:$0xf]
        %v797 = vld [vmem:[%s773 + $0x5c] sm:$0xf]
        %v798 = vld [vmem:[%s773 + $0x60] sm:$0xf]
        %v799 = vld [vmem:[%s773 + $0x64] sm:$0xf]
        %v800 = vld [vmem:[%s773 + $0x68] sm:$0xf]
        %v801 = vld [vmem:[%s773 + $0x6c] sm:$0xf]
        %v802 = vld [vmem:[%s773 + $0x70] sm:$0xf]
        %v803 = vld [vmem:[%s773 + $0x74] sm:$0xf]
        %v804 = vld [vmem:[%s773 + $0x78] sm:$0xf]
        %v805 = vld [vmem:[%s773 + $0x7c] sm:$0xf]
        %v806 = vld [vmem:[%s773 + $0x80] sm:$0xf]
        %v807 = vld [vmem:[%s773 + $0x84] sm:$0xf]
        %v808 = vld [vmem:[%s773 + $0x88] sm:$0xf]
        %v809 = vld [vmem:[%s773 + $0x8c] sm:$0xf]
        %v810 = vld [vmem:[%s773 + $0x90] sm:$0xf]
        %v811 = vld [vmem:[%s773 + $0x94] sm:$0xf]
        %v812 = vld [vmem:[%s773 + $0x98] sm:$0xf]
        %v813 = vld [vmem:[%s773 + $0x9c] sm:$0xf]
        %v814 = vld [vmem:[%s773 + $0xa0] sm:$0xf]
        %v815 = vld [vmem:[%s773 + $0xa4] sm:$0xf]
        %v816 = vld [vmem:[%s773 + $0xa8] sm:$0xf]
        %v817 = vld [vmem:[%s773 + $0xac] sm:$0xf]
        %v818 = vld [vmem:[%s773 + $0xb0] sm:$0xf]
        %v819 = vld [vmem:[%s773 + $0xb4] sm:$0xf]
        %v820 = vld [vmem:[%s773 + $0xb8] sm:$0xf]
        %v821 = vld [vmem:[%s773 + $0xbc] sm:$0xf]
        %v822 = vld [vmem:[%s773 + $0xc0] sm:$0xf]
        %v823 = vld [vmem:[%s773 + $0xc4] sm:$0xf]
        %v824 = vld [vmem:[%s773 + $0xc8] sm:$0xf]
        %v825 = vld [vmem:[%s773 + $0xcc] sm:$0xf]
        %v826 = vld [vmem:[%s773 + $0xd0] sm:$0xf]
        %v827 = vld [vmem:[%s773 + $0xd4] sm:$0xf]
        %v828 = vld [vmem:[%s773 + $0xd8] sm:$0xf]
        %v829 = vld [vmem:[%s773 + $0xdc] sm:$0xf]
        %v830 = vld [vmem:[%s773 + $0xe0] sm:$0xf]
        %v831 = vld [vmem:[%s773 + $0xe4] sm:$0xf]
        %v832 = vld [vmem:[%s773 + $0xe8] sm:$0xf]
        %v833 = vld [vmem:[%s773 + $0xec] sm:$0xf]
        %v834 = vld [vmem:[%s773 + $0xf0] sm:$0xf]
        %v835 = vld [vmem:[%s773 + $0xf4] sm:$0xf]
        %v836 = vld [vmem:[%s773 + $0xf8] sm:$0xf]
        %v837 = vld [vmem:[%s773 + $0xfc] sm:$0xf]
        %v902 = vunpack.c.l.b16 %v774
        %v903 = vunpack.c.l.b16 %v775
        %v904 = vunpack.c.l.b16 %v776
        %v905 = vunpack.c.l.b16 %v777
        %v906 = vunpack.c.l.b16 %v778
        %v907 = vunpack.c.l.b16 %v779
        %v908 = vunpack.c.l.b16 %v780
        %v909 = vunpack.c.l.b16 %v781
        %v910 = vunpack.c.l.b16 %v782
        %v911 = vunpack.c.l.b16 %v783
        %v912 = vunpack.c.l.b16 %v784
        %v913 = vunpack.c.l.b16 %v785
        %v914 = vunpack.c.l.b16 %v786
        %v915 = vunpack.c.l.b16 %v787
        %v916 = vunpack.c.l.b16 %v788
        %v917 = vunpack.c.l.b16 %v789
        %v918 = vunpack.c.l.b16 %v790
        %v919 = vunpack.c.l.b16 %v791
        %v920 = vunpack.c.l.b16 %v792
        %v921 = vunpack.c.l.b16 %v793
        %v922 = vunpack.c.l.b16 %v794
        %v923 = vunpack.c.l.b16 %v795
        %v924 = vunpack.c.l.b16 %v796
        %v925 = vunpack.c.l.b16 %v797
        %v926 = vunpack.c.l.b16 %v798
        %v927 = vunpack.c.l.b16 %v799
        %v928 = vunpack.c.l.b16 %v800
        %v929 = vunpack.c.l.b16 %v801
        %v930 = vunpack.c.l.b16 %v802
        %v931 = vunpack.c.l.b16 %v803
        %v932 = vunpack.c.l.b16 %v804
        %v933 = vunpack.c.l.b16 %v805
        %v934 = vunpack.c.l.b16 %v806
        %v935 = vunpack.c.l.b16 %v807
        %v936 = vunpack.c.l.b16 %v808
        %v937 = vunpack.c.l.b16 %v809
        %v938 = vunpack.c.l.b16 %v810
        %v939 = vunpack.c.l.b16 %v811
        %v940 = vunpack.c.l.b16 %v812
        %v941 = vunpack.c.l.b16 %v813
        %v942 = vunpack.c.l.b16 %v814
        %v943 = vunpack.c.l.b16 %v815
        %v944 = vunpack.c.l.b16 %v816
        %v945 = vunpack.c.l.b16 %v817
        %v946 = vunpack.c.l.b16 %v818
        %v947 = vunpack.c.l.b16 %v819
        %v948 = vunpack.c.l.b16 %v820
        %v949 = vunpack.c.l.b16 %v821
        %v950 = vunpack.c.l.b16 %v822
        %v951 = vunpack.c.l.b16 %v823
        %v952 = vunpack.c.l.b16 %v824
        %v953 = vunpack.c.l.b16 %v825
        %v954 = vunpack.c.l.b16 %v826
        %v955 = vunpack.c.l.b16 %v827
        %v956 = vunpack.c.l.b16 %v828
        %v957 = vunpack.c.l.b16 %v829
        %v958 = vunpack.c.l.b16 %v830
        %v959 = vunpack.c.l.b16 %v831
        %v960 = vunpack.c.l.b16 %v832
        %v961 = vunpack.c.l.b16 %v833
        %v962 = vunpack.c.l.b16 %v834
        %v963 = vunpack.c.l.b16 %v835
        %v964 = vunpack.c.l.b16 %v836
        %v965 = vunpack.c.l.b16 %v837
        %v966 = vpack.c.b16 %v903, %v902
        %v967 = vpack.c.b16 %v905, %v904
        %v968 = vpack.c.b16 %v907, %v906
        %v969 = vpack.c.b16 %v909, %v908
        %v970 = vpack.c.b16 %v911, %v910
        %v971 = vpack.c.b16 %v913, %v912
        %v972 = vpack.c.b16 %v915, %v914
        %v973 = vpack.c.b16 %v917, %v916
        %v974 = vpack.c.b16 %v919, %v918
        %v975 = vpack.c.b16 %v921, %v920
        %v976 = vpack.c.b16 %v923, %v922
        %v977 = vpack.c.b16 %v925, %v924
        %v978 = vpack.c.b16 %v927, %v926
        %v979 = vpack.c.b16 %v929, %v928
        %v980 = vpack.c.b16 %v931, %v930
        %v981 = vpack.c.b16 %v933, %v932
        %v982 = vpack.c.b16 %v935, %v934
        %v983 = vpack.c.b16 %v937, %v936
        %v984 = vpack.c.b16 %v939, %v938
        %v985 = vpack.c.b16 %v941, %v940
        %v986 = vpack.c.b16 %v943, %v942
        %v987 = vpack.c.b16 %v945, %v944
        %v988 = vpack.c.b16 %v947, %v946
        %v989 = vpack.c.b16 %v949, %v948
        %v990 = vpack.c.b16 %v951, %v950
        %v991 = vpack.c.b16 %v953, %v952
        %v992 = vpack.c.b16 %v955, %v954
        %v993 = vpack.c.b16 %v957, %v956
        %v994 = vpack.c.b16 %v959, %v958
        %v995 = vpack.c.b16 %v961, %v960
        %v996 = vpack.c.b16 %v963, %v962
        %v997 = vpack.c.b16 %v965, %v964
        %1030 = vmatprep.subr.bf16.mxu0 0
        %1031 = vmatpush1.bf16.msra.mxu0 %v973
        %1032 = vmatprep.subr.bf16.mxu0 0
        %1033 = vmatpush1.bf16.msra.mxu0 %v972
        %1034 = vmatprep.subr.bf16.mxu0 0
        %1035 = vmatpush1.bf16.msra.mxu0 %v971
        %1036 = vmatprep.subr.bf16.mxu0 0
        %1037 = vmatpush1.bf16.msra.mxu0 %v970
        %1038 = vmatprep.subr.bf16.mxu0 0
        %1039 = vmatpush1.bf16.msra.mxu0 %v969
        %1040 = vmatprep.subr.bf16.mxu0 0
        %1041 = vmatpush1.bf16.msra.mxu0 %v968
        %1042 = vmatprep.subr.bf16.mxu0 0
        %1043 = vmatpush1.bf16.msra.mxu0 %v967
        %1044 = vmatprep.subr.bf16.mxu0 0
        %1045 = vmatpush1.bf16.msra.mxu0 %v966
        %1046 = vmatprep.subr.bf16.mxu0 0
        %1047 = vmatpush2.bf16.msra.mxu0 %v981
        %1048 = vmatprep.subr.bf16.mxu0 0
        %1049 = vmatpush2.bf16.msra.mxu0 %v980
        %1050 = vmatprep.subr.bf16.mxu0 0
        %1051 = vmatpush2.bf16.msra.mxu0 %v979
        %1052 = vmatprep.subr.bf16.mxu0 0
        %1053 = vmatpush2.bf16.msra.mxu0 %v978
        %1054 = vmatprep.subr.bf16.mxu0 0
        %1055 = vmatpush2.bf16.msra.mxu0 %v977
        %1056 = vmatprep.subr.bf16.mxu0 0
        %1057 = vmatpush2.bf16.msra.mxu0 %v976
        %1058 = vmatprep.subr.bf16.mxu0 0
        %1059 = vmatpush2.bf16.msra.mxu0 %v975
        %1060 = vmatprep.subr.bf16.mxu0 0
        %1061 = vmatpush2.bf16.msra.mxu0 %v974
        %1062 = vmatprep.mubr.bf16.mxu0 %v491
        %1063 = vmatmul.mubr.bf16.gmra.mxu0 %v484
        %v1064 = vpop.f32.mrf.mxu0
        %v1065 = vadd.f32 0.0, %v1064
        %v1066 = vpop.f32.mrf.mxu0
        %v1067 = vpop.f32.mrf.mxu0
        %v1068 = vpop.f32.mrf.mxu0
        %1069 = vdwg.mxu0
        %1070 = vmatprep.subr.bf16.mxu0 0
        %1071 = vmatpush1.bf16.msra.mxu0 %v989
        %1072 = vmatprep.subr.bf16.mxu0 0
        %1073 = vmatpush1.bf16.msra.mxu0 %v988
        %1074 = vmatprep.subr.bf16.mxu0 0
        %1075 = vmatpush1.bf16.msra.mxu0 %v987
        %1076 = vmatprep.subr.bf16.mxu0 0
        %1077 = vmatpush1.bf16.msra.mxu0 %v986
        %1078 = vmatprep.subr.bf16.mxu0 0
        %1079 = vmatpush1.bf16.msra.mxu0 %v985
        %1080 = vmatprep.subr.bf16.mxu0 0
        %1081 = vmatpush1.bf16.msra.mxu0 %v984
        %1082 = vmatprep.subr.bf16.mxu0 0
        %1083 = vmatpush1.bf16.msra.mxu0 %v983
        %1084 = vmatprep.subr.bf16.mxu0 0
        %1085 = vmatpush1.bf16.msra.mxu0 %v982
        %1086 = vmatprep.subr.bf16.mxu0 0
        %1087 = vmatpush2.bf16.msra.mxu0 %v997
        %1088 = vmatprep.subr.bf16.mxu0 0
        %1089 = vmatpush2.bf16.msra.mxu0 %v996
        %1090 = vmatprep.subr.bf16.mxu0 0
        %1091 = vmatpush2.bf16.msra.mxu0 %v995
        %1092 = vmatprep.subr.bf16.mxu0 0
        %1093 = vmatpush2.bf16.msra.mxu0 %v994
        %1094 = vmatprep.subr.bf16.mxu0 0
        %1095 = vmatpush2.bf16.msra.mxu0 %v993
        %1096 = vmatprep.subr.bf16.mxu0 0
        %1097 = vmatpush2.bf16.msra.mxu0 %v992
        %1098 = vmatprep.subr.bf16.mxu0 0
        %1099 = vmatpush2.bf16.msra.mxu0 %v991
        %1100 = vmatprep.subr.bf16.mxu0 0
        %1101 = vmatpush2.bf16.msra.mxu0 %v990
        %1102 = vmatprep.mubr.bf16.mxu0 %v493
        %1103 = vmatmul.mubr.bf16.gmra.mxu0 %v492
        %v1104 = vpop.f32.mrf.mxu0
        %v1105 = vadd.f32 %v1065, %v1104
        %v1106 = vpop.f32.mrf.mxu0
        %v1107 = vpop.f32.mrf.mxu0
        %v1108 = vpop.f32.mrf.mxu0
        %1109 = vdwg.mxu0
        %v1110 = vadd.f32 %v772, %v1105
        %s1111 = scalar_lea.vmem %s329, 2 [#allocation4]
        %v1112 = vld [vmem:[%s1111] sm:$0x1]
        %s1113 = scalar_lea.vmem %s321, 512 [#allocation2]
        %v1114 = vld [vmem:[%s1113] sm:$0xf]
        %v1115 = vld [vmem:[%s1113 + $0x4] sm:$0xf]
        %v1116 = vld [vmem:[%s1113 + $0x8] sm:$0xf]
        %v1117 = vld [vmem:[%s1113 + $0xc] sm:$0xf]
        %v1118 = vld [vmem:[%s1113 + $0x10] sm:$0xf]
        %v1119 = vld [vmem:[%s1113 + $0x14] sm:$0xf]
        %v1120 = vld [vmem:[%s1113 + $0x18] sm:$0xf]
        %v1121 = vld [vmem:[%s1113 + $0x1c] sm:$0xf]
        %v1122 = vld [vmem:[%s1113 + $0x20] sm:$0xf]
        %v1123 = vld [vmem:[%s1113 + $0x24] sm:$0xf]
        %v1124 = vld [vmem:[%s1113 + $0x28] sm:$0xf]
        %v1125 = vld [vmem:[%s1113 + $0x2c] sm:$0xf]
        %v1126 = vld [vmem:[%s1113 + $0x30] sm:$0xf]
        %v1127 = vld [vmem:[%s1113 + $0x34] sm:$0xf]
        %v1128 = vld [vmem:[%s1113 + $0x38] sm:$0xf]
        %v1129 = vld [vmem:[%s1113 + $0x3c] sm:$0xf]
        %v1130 = vld [vmem:[%s1113 + $0x40] sm:$0xf]
        %v1131 = vld [vmem:[%s1113 + $0x44] sm:$0xf]
        %v1132 = vld [vmem:[%s1113 + $0x48] sm:$0xf]
        %v1133 = vld [vmem:[%s1113 + $0x4c] sm:$0xf]
        %v1134 = vld [vmem:[%s1113 + $0x50] sm:$0xf]
        %v1135 = vld [vmem:[%s1113 + $0x54] sm:$0xf]
        %v1136 = vld [vmem:[%s1113 + $0x58] sm:$0xf]
        %v1137 = vld [vmem:[%s1113 + $0x5c] sm:$0xf]
        %v1138 = vld [vmem:[%s1113 + $0x60] sm:$0xf]
        %v1139 = vld [vmem:[%s1113 + $0x64] sm:$0xf]
        %v1140 = vld [vmem:[%s1113 + $0x68] sm:$0xf]
        %v1141 = vld [vmem:[%s1113 + $0x6c] sm:$0xf]
        %v1142 = vld [vmem:[%s1113 + $0x70] sm:$0xf]
        %v1143 = vld [vmem:[%s1113 + $0x74] sm:$0xf]
        %v1144 = vld [vmem:[%s1113 + $0x78] sm:$0xf]
        %v1145 = vld [vmem:[%s1113 + $0x7c] sm:$0xf]
        %v1146 = vld [vmem:[%s1113 + $0x80] sm:$0xf]
        %v1147 = vld [vmem:[%s1113 + $0x84] sm:$0xf]
        %v1148 = vld [vmem:[%s1113 + $0x88] sm:$0xf]
        %v1149 = vld [vmem:[%s1113 + $0x8c] sm:$0xf]
        %v1150 = vld [vmem:[%s1113 + $0x90] sm:$0xf]
        %v1151 = vld [vmem:[%s1113 + $0x94] sm:$0xf]
        %v1152 = vld [vmem:[%s1113 + $0x98] sm:$0xf]
        %v1153 = vld [vmem:[%s1113 + $0x9c] sm:$0xf]
        %v1154 = vld [vmem:[%s1113 + $0xa0] sm:$0xf]
        %v1155 = vld [vmem:[%s1113 + $0xa4] sm:$0xf]
        %v1156 = vld [vmem:[%s1113 + $0xa8] sm:$0xf]
        %v1157 = vld [vmem:[%s1113 + $0xac] sm:$0xf]
        %v1158 = vld [vmem:[%s1113 + $0xb0] sm:$0xf]
        %v1159 = vld [vmem:[%s1113 + $0xb4] sm:$0xf]
        %v1160 = vld [vmem:[%s1113 + $0xb8] sm:$0xf]
        %v1161 = vld [vmem:[%s1113 + $0xbc] sm:$0xf]
        %v1162 = vld [vmem:[%s1113 + $0xc0] sm:$0xf]
        %v1163 = vld [vmem:[%s1113 + $0xc4] sm:$0xf]
        %v1164 = vld [vmem:[%s1113 + $0xc8] sm:$0xf]
        %v1165 = vld [vmem:[%s1113 + $0xcc] sm:$0xf]
        %v1166 = vld [vmem:[%s1113 + $0xd0] sm:$0xf]
        %v1167 = vld [vmem:[%s1113 + $0xd4] sm:$0xf]
        %v1168 = vld [vmem:[%s1113 + $0xd8] sm:$0xf]
        %v1169 = vld [vmem:[%s1113 + $0xdc] sm:$0xf]
        %v1170 = vld [vmem:[%s1113 + $0xe0] sm:$0xf]
        %v1171 = vld [vmem:[%s1113 + $0xe4] sm:$0xf]
        %v1172 = vld [vmem:[%s1113 + $0xe8] sm:$0xf]
        %v1173 = vld [vmem:[%s1113 + $0xec] sm:$0xf]
        %v1174 = vld [vmem:[%s1113 + $0xf0] sm:$0xf]
        %v1175 = vld [vmem:[%s1113 + $0xf4] sm:$0xf]
        %v1176 = vld [vmem:[%s1113 + $0xf8] sm:$0xf]
        %v1177 = vld [vmem:[%s1113 + $0xfc] sm:$0xf]
        %v1242 = vunpack.c.l.b16 %v1114
        %v1243 = vunpack.c.l.b16 %v1115
        %v1244 = vunpack.c.l.b16 %v1116
        %v1245 = vunpack.c.l.b16 %v1117
        %v1246 = vunpack.c.l.b16 %v1118
        %v1247 = vunpack.c.l.b16 %v1119
        %v1248 = vunpack.c.l.b16 %v1120
        %v1249 = vunpack.c.l.b16 %v1121
        %v1250 = vunpack.c.l.b16 %v1122
        %v1251 = vunpack.c.l.b16 %v1123
        %v1252 = vunpack.c.l.b16 %v1124
        %v1253 = vunpack.c.l.b16 %v1125
        %v1254 = vunpack.c.l.b16 %v1126
        %v1255 = vunpack.c.l.b16 %v1127
        %v1256 = vunpack.c.l.b16 %v1128
        %v1257 = vunpack.c.l.b16 %v1129
        %v1258 = vunpack.c.l.b16 %v1130
        %v1259 = vunpack.c.l.b16 %v1131
        %v1260 = vunpack.c.l.b16 %v1132
        %v1261 = vunpack.c.l.b16 %v1133
        %v1262 = vunpack.c.l.b16 %v1134
        %v1263 = vunpack.c.l.b16 %v1135
        %v1264 = vunpack.c.l.b16 %v1136
        %v1265 = vunpack.c.l.b16 %v1137
        %v1266 = vunpack.c.l.b16 %v1138
        %v1267 = vunpack.c.l.b16 %v1139
        %v1268 = vunpack.c.l.b16 %v1140
        %v1269 = vunpack.c.l.b16 %v1141
        %v1270 = vunpack.c.l.b16 %v1142
        %v1271 = vunpack.c.l.b16 %v1143
        %v1272 = vunpack.c.l.b16 %v1144
        %v1273 = vunpack.c.l.b16 %v1145
        %v1274 = vunpack.c.l.b16 %v1146
        %v1275 = vunpack.c.l.b16 %v1147
        %v1276 = vunpack.c.l.b16 %v1148
        %v1277 = vunpack.c.l.b16 %v1149
        %v1278 = vunpack.c.l.b16 %v1150
        %v1279 = vunpack.c.l.b16 %v1151
        %v1280 = vunpack.c.l.b16 %v1152
        %v1281 = vunpack.c.l.b16 %v1153
        %v1282 = vunpack.c.l.b16 %v1154
        %v1283 = vunpack.c.l.b16 %v1155
        %v1284 = vunpack.c.l.b16 %v1156
        %v1285 = vunpack.c.l.b16 %v1157
        %v1286 = vunpack.c.l.b16 %v1158
        %v1287 = vunpack.c.l.b16 %v1159
        %v1288 = vunpack.c.l.b16 %v1160
        %v1289 = vunpack.c.l.b16 %v1161
        %v1290 = vunpack.c.l.b16 %v1162
        %v1291 = vunpack.c.l.b16 %v1163
        %v1292 = vunpack.c.l.b16 %v1164
        %v1293 = vunpack.c.l.b16 %v1165
        %v1294 = vunpack.c.l.b16 %v1166
        %v1295 = vunpack.c.l.b16 %v1167
        %v1296 = vunpack.c.l.b16 %v1168
        %v1297 = vunpack.c.l.b16 %v1169
        %v1298 = vunpack.c.l.b16 %v1170
        %v1299 = vunpack.c.l.b16 %v1171
        %v1300 = vunpack.c.l.b16 %v1172
        %v1301 = vunpack.c.l.b16 %v1173
        %v1302 = vunpack.c.l.b16 %v1174
        %v1303 = vunpack.c.l.b16 %v1175
        %v1304 = vunpack.c.l.b16 %v1176
        %v1305 = vunpack.c.l.b16 %v1177
        %v1306 = vpack.c.b16 %v1243, %v1242
        %v1307 = vpack.c.b16 %v1245, %v1244
        %v1308 = vpack.c.b16 %v1247, %v1246
        %v1309 = vpack.c.b16 %v1249, %v1248
        %v1310 = vpack.c.b16 %v1251, %v1250
        %v1311 = vpack.c.b16 %v1253, %v1252
        %v1312 = vpack.c.b16 %v1255, %v1254
        %v1313 = vpack.c.b16 %v1257, %v1256
        %v1314 = vpack.c.b16 %v1259, %v1258
        %v1315 = vpack.c.b16 %v1261, %v1260
        %v1316 = vpack.c.b16 %v1263, %v1262
        %v1317 = vpack.c.b16 %v1265, %v1264
        %v1318 = vpack.c.b16 %v1267, %v1266
        %v1319 = vpack.c.b16 %v1269, %v1268
        %v1320 = vpack.c.b16 %v1271, %v1270
        %v1321 = vpack.c.b16 %v1273, %v1272
        %v1322 = vpack.c.b16 %v1275, %v1274
        %v1323 = vpack.c.b16 %v1277, %v1276
        %v1324 = vpack.c.b16 %v1279, %v1278
        %v1325 = vpack.c.b16 %v1281, %v1280
        %v1326 = vpack.c.b16 %v1283, %v1282
        %v1327 = vpack.c.b16 %v1285, %v1284
        %v1328 = vpack.c.b16 %v1287, %v1286
        %v1329 = vpack.c.b16 %v1289, %v1288
        %v1330 = vpack.c.b16 %v1291, %v1290
        %v1331 = vpack.c.b16 %v1293, %v1292
        %v1332 = vpack.c.b16 %v1295, %v1294
        %v1333 = vpack.c.b16 %v1297, %v1296
        %v1334 = vpack.c.b16 %v1299, %v1298
        %v1335 = vpack.c.b16 %v1301, %v1300
        %v1336 = vpack.c.b16 %v1303, %v1302
        %v1337 = vpack.c.b16 %v1305, %v1304
        %1370 = vmatprep.subr.bf16.mxu0 0
        %1371 = vmatpush1.bf16.msra.mxu0 %v1313
        %1372 = vmatprep.subr.bf16.mxu0 0
        %1373 = vmatpush1.bf16.msra.mxu0 %v1312
        %1374 = vmatprep.subr.bf16.mxu0 0
        %1375 = vmatpush1.bf16.msra.mxu0 %v1311
        %1376 = vmatprep.subr.bf16.mxu0 0
        %1377 = vmatpush1.bf16.msra.mxu0 %v1310
        %1378 = vmatprep.subr.bf16.mxu0 0
        %1379 = vmatpush1.bf16.msra.mxu0 %v1309
        %1380 = vmatprep.subr.bf16.mxu0 0
        %1381 = vmatpush1.bf16.msra.mxu0 %v1308
        %1382 = vmatprep.subr.bf16.mxu0 0
        %1383 = vmatpush1.bf16.msra.mxu0 %v1307
        %1384 = vmatprep.subr.bf16.mxu0 0
        %1385 = vmatpush1.bf16.msra.mxu0 %v1306
        %1386 = vmatprep.subr.bf16.mxu0 0
        %1387 = vmatpush2.bf16.msra.mxu0 %v1321
        %1388 = vmatprep.subr.bf16.mxu0 0
        %1389 = vmatpush2.bf16.msra.mxu0 %v1320
        %1390 = vmatprep.subr.bf16.mxu0 0
        %1391 = vmatpush2.bf16.msra.mxu0 %v1319
        %1392 = vmatprep.subr.bf16.mxu0 0
        %1393 = vmatpush2.bf16.msra.mxu0 %v1318
        %1394 = vmatprep.subr.bf16.mxu0 0
        %1395 = vmatpush2.bf16.msra.mxu0 %v1317
        %1396 = vmatprep.subr.bf16.mxu0 0
        %1397 = vmatpush2.bf16.msra.mxu0 %v1316
        %1398 = vmatprep.subr.bf16.mxu0 0
        %1399 = vmatpush2.bf16.msra.mxu0 %v1315
        %1400 = vmatprep.subr.bf16.mxu0 0
        %1401 = vmatpush2.bf16.msra.mxu0 %v1314
        %1402 = vmatprep.mubr.bf16.mxu0 %v491
        %1403 = vmatmul.mubr.bf16.gmra.mxu0 %v484
        %v1404 = vpop.f32.mrf.mxu0
        %v1405 = vadd.f32 0.0, %v1404
        %v1406 = vpop.f32.mrf.mxu0
        %v1407 = vpop.f32.mrf.mxu0
        %v1408 = vpop.f32.mrf.mxu0
        %1409 = vdwg.mxu0
        %1410 = vmatprep.subr.bf16.mxu0 0
        %1411 = vmatpush1.bf16.msra.mxu0 %v1329
        %1412 = vmatprep.subr.bf16.mxu0 0
        %1413 = vmatpush1.bf16.msra.mxu0 %v1328
        %1414 = vmatprep.subr.bf16.mxu0 0
        %1415 = vmatpush1.bf16.msra.mxu0 %v1327
        %1416 = vmatprep.subr.bf16.mxu0 0
        %1417 = vmatpush1.bf16.msra.mxu0 %v1326
        %1418 = vmatprep.subr.bf16.mxu0 0
        %1419 = vmatpush1.bf16.msra.mxu0 %v1325
        %1420 = vmatprep.subr.bf16.mxu0 0
        %1421 = vmatpush1.bf16.msra.mxu0 %v1324
        %1422 = vmatprep.subr.bf16.mxu0 0
        %1423 = vmatpush1.bf16.msra.mxu0 %v1323
        %1424 = vmatprep.subr.bf16.mxu0 0
        %1425 = vmatpush1.bf16.msra.mxu0 %v1322
        %1426 = vmatprep.subr.bf16.mxu0 0
        %1427 = vmatpush2.bf16.msra.mxu0 %v1337
        %1428 = vmatprep.subr.bf16.mxu0 0
        %1429 = vmatpush2.bf16.msra.mxu0 %v1336
        %1430 = vmatprep.subr.bf16.mxu0 0
        %1431 = vmatpush2.bf16.msra.mxu0 %v1335
        %1432 = vmatprep.subr.bf16.mxu0 0
        %1433 = vmatpush2.bf16.msra.mxu0 %v1334
        %1434 = vmatprep.subr.bf16.mxu0 0
        %1435 = vmatpush2.bf16.msra.mxu0 %v1333
        %1436 = vmatprep.subr.bf16.mxu0 0
        %1437 = vmatpush2.bf16.msra.mxu0 %v1332
        %1438 = vmatprep.subr.bf16.mxu0 0
        %1439 = vmatpush2.bf16.msra.mxu0 %v1331
        %1440 = vmatprep.subr.bf16.mxu0 0
        %1441 = vmatpush2.bf16.msra.mxu0 %v1330
        %1442 = vmatprep.mubr.bf16.mxu0 %v493
        %1443 = vmatmul.mubr.bf16.gmra.mxu0 %v492
        %v1444 = vpop.f32.mrf.mxu0
        %v1445 = vadd.f32 %v1405, %v1444
        %v1446 = vpop.f32.mrf.mxu0
        %v1447 = vpop.f32.mrf.mxu0
        %v1448 = vpop.f32.mrf.mxu0
        %1449 = vdwg.mxu0
        %v1450 = vadd.f32 %v1112, %v1445
        %v1451 = vld [vmem:[%s337] sm:$0xff]
        %v1452 = vld [vmem:[%s337 + $0x8] sm:$0xff]
        %v1453 = vld [vmem:[%s337 + $0x10] sm:$0xff]
        %v1454 = vld [vmem:[%s337 + $0x18] sm:$0xff]
        %v1455 = vld [vmem:[%s337 + $0x20] sm:$0xff]
        %v1456 = vld [vmem:[%s337 + $0x28] sm:$0xff]
        %v1457 = vld [vmem:[%s337 + $0x30] sm:$0xff]
        %v1458 = vld [vmem:[%s337 + $0x38] sm:$0xff]
        %v1459 = vld [vmem:[%s393] sm:$0x7]
        %vm1460 = vcmask 523264
        %v1462 = vsel %vm1460, %v1459, 0
        %1464 = vmatprep.subr.mxu0 0.0
        %1465 = vmatpush1.msra.mxu0 0.0
        %1466 = vmatprep.subr.mxu0 0.0
        %1467 = vmatpush1.msra.mxu0 0.0
        %1468 = vmatprep.subr.mxu0 0.0
        %1469 = vmatpush1.msra.mxu0 0.0
        %1470 = vmatprep.subr.mxu0 0.0
        %1471 = vmatpush1.msra.mxu0 0.0
        %1472 = vmatprep.subr.mxu0 0.0
        %1473 = vmatpush1.msra.mxu0 0.0
        %1474 = vmatprep.subr.mxu0 0.0
        %1475 = vmatpush1.msra.mxu0 0.0
        %1476 = vmatprep.subr.mxu0 0.0
        %1477 = vmatpush1.msra.mxu0 0.0
        %1478 = vmatprep.subr.mxu0 0.0
        %1479 = vmatpush1.msra.mxu0 0.0
        %1480 = vmatprep.subr.mxu0 0.0
        %1481 = vmatpush1.msra.mxu0 %v1458
        %1482 = vmatprep.subr.mxu0 0.0
        %1483 = vmatpush1.msra.mxu0 %v1457
        %1484 = vmatprep.subr.mxu0 0.0
        %1485 = vmatpush1.msra.mxu0 %v1456
        %1486 = vmatprep.subr.mxu0 0.0
        %1487 = vmatpush1.msra.mxu0 %v1455
        %1488 = vmatprep.subr.mxu0 0.0
        %1489 = vmatpush1.msra.mxu0 %v1454
        %1490 = vmatprep.subr.mxu0 0.0
        %1491 = vmatpush1.msra.mxu0 %v1453
        %1492 = vmatprep.subr.mxu0 0.0
        %1493 = vmatpush1.msra.mxu0 %v1452
        %1494 = vmatprep.subr.mxu0 0.0
        %1495 = vmatpush1.msra.mxu0 %v1451
        %1496 = vmatprep.subr.mxu0 0.0
        %1497 = vmatpush2.msra.mxu0 0.0
        %1498 = vmatprep.subr.mxu0 0.0
        %1499 = vmatpush2.msra.mxu0 0.0
        %1500 = vmatprep.subr.mxu0 0.0
        %1501 = vmatpush2.msra.mxu0 0.0
        %1502 = vmatprep.subr.mxu0 0.0
        %1503 = vmatpush2.msra.mxu0 0.0
        %1504 = vmatprep.subr.mxu0 0.0
        %1505 = vmatpush2.msra.mxu0 0.0
        %1506 = vmatprep.subr.mxu0 0.0
        %1507 = vmatpush2.msra.mxu0 0.0
        %1508 = vmatprep.subr.mxu0 0.0
        %1509 = vmatpush2.msra.mxu0 0.0
        %1510 = vmatprep.subr.mxu0 0.0
        %1511 = vmatpush2.msra.mxu0 0.0
        %1512 = vmatprep.subr.mxu0 0.0
        %1513 = vmatpush2.msra.mxu0 0.0
        %1514 = vmatprep.subr.mxu0 0.0
        %1515 = vmatpush2.msra.mxu0 0.0
        %1516 = vmatprep.subr.mxu0 0.0
        %1517 = vmatpush2.msra.mxu0 0.0
        %1518 = vmatprep.subr.mxu0 0.0
        %1519 = vmatpush2.msra.mxu0 0.0
        %1520 = vmatprep.subr.mxu0 0.0
        %1521 = vmatpush2.msra.mxu0 0.0
        %1522 = vmatprep.subr.mxu0 0.0
        %1523 = vmatpush2.msra.mxu0 0.0
        %1524 = vmatprep.subr.mxu0 0.0
        %1525 = vmatpush2.msra.mxu0 0.0
        %1526 = vmatprep.subr.mxu0 0.0
        %1527 = vmatpush2.msra.mxu0 0.0
        %1528 = vmatprep.mubr.f32.mxu0 0.0
        %1529 = vmatmul.mubr.f32.gmra.mxu0 %v1462
        %v1530 = vpop.f32.mrf.mxu0
        %v1531 = vadd.f32 0.0, %v1530
        %v1532 = vpop.f32.mrf.mxu0
        %1533 = vdwg.mxu0
        %s1534 = scalar_lea.vmem %s393, 4
        %v1535 = vld [vmem:[%s1534] sm:$0x7]
        %v1537 = vsel %vm1460, %v1535, 0
        %1539 = vmatprep.subr.mxu0 0.0
        %1540 = vmatpush1.msra.mxu0 0.0
        %1541 = vmatprep.subr.mxu0 0.0
        %1542 = vmatpush1.msra.mxu0 0.0
        %1543 = vmatprep.subr.mxu0 0.0
        %1544 = vmatpush1.msra.mxu0 0.0
        %1545 = vmatprep.subr.mxu0 0.0
        %1546 = vmatpush1.msra.mxu0 0.0
        %1547 = vmatprep.subr.mxu0 0.0
        %1548 = vmatpush1.msra.mxu0 0.0
        %1549 = vmatprep.subr.mxu0 0.0
        %1550 = vmatpush1.msra.mxu0 0.0
        %1551 = vmatprep.subr.mxu0 0.0
        %1552 = vmatpush1.msra.mxu0 0.0
        %1553 = vmatprep.subr.mxu0 0.0
        %1554 = vmatpush1.msra.mxu0 0.0
        %1555 = vmatprep.subr.mxu0 0.0
        %1556 = vmatpush1.msra.mxu0 %v1458
        %1557 = vmatprep.subr.mxu0 0.0
        %1558 = vmatpush1.msra.mxu0 %v1457
        %1559 = vmatprep.subr.mxu0 0.0
        %1560 = vmatpush1.msra.mxu0 %v1456
        %1561 = vmatprep.subr.mxu0 0.0
        %1562 = vmatpush1.msra.mxu0 %v1455
        %1563 = vmatprep.subr.mxu0 0.0
        %1564 = vmatpush1.msra.mxu0 %v1454
        %1565 = vmatprep.subr.mxu0 0.0
        %1566 = vmatpush1.msra.mxu0 %v1453
        %1567 = vmatprep.subr.mxu0 0.0
        %1568 = vmatpush1.msra.mxu0 %v1452
        %1569 = vmatprep.subr.mxu0 0.0
        %1570 = vmatpush1.msra.mxu0 %v1451
        %1571 = vmatprep.subr.mxu0 0.0
        %1572 = vmatpush2.msra.mxu0 0.0
        %1573 = vmatprep.subr.mxu0 0.0
        %1574 = vmatpush2.msra.mxu0 0.0
        %1575 = vmatprep.subr.mxu0 0.0
        %1576 = vmatpush2.msra.mxu0 0.0
        %1577 = vmatprep.subr.mxu0 0.0
        %1578 = vmatpush2.msra.mxu0 0.0
        %1579 = vmatprep.subr.mxu0 0.0
        %1580 = vmatpush2.msra.mxu0 0.0
        %1581 = vmatprep.subr.mxu0 0.0
        %1582 = vmatpush2.msra.mxu0 0.0
        %1583 = vmatprep.subr.mxu0 0.0
        %1584 = vmatpush2.msra.mxu0 0.0
        %1585 = vmatprep.subr.mxu0 0.0
        %1586 = vmatpush2.msra.mxu0 0.0
        %1587 = vmatprep.subr.mxu0 0.0
        %1588 = vmatpush2.msra.mxu0 0.0
        %1589 = vmatprep.subr.mxu0 0.0
        %1590 = vmatpush2.msra.mxu0 0.0
        %1591 = vmatprep.subr.mxu0 0.0
        %1592 = vmatpush2.msra.mxu0 0.0
        %1593 = vmatprep.subr.mxu0 0.0
        %1594 = vmatpush2.msra.mxu0 0.0
        %1595 = vmatprep.subr.mxu0 0.0
        %1596 = vmatpush2.msra.mxu0 0.0
        %1597 = vmatprep.subr.mxu0 0.0
        %1598 = vmatpush2.msra.mxu0 0.0
        %1599 = vmatprep.subr.mxu0 0.0
        %1600 = vmatpush2.msra.mxu0 0.0
        %1601 = vmatprep.subr.mxu0 0.0
        %1602 = vmatpush2.msra.mxu0 0.0
        %1603 = vmatprep.mubr.f32.mxu0 0.0
        %1604 = vmatmul.mubr.f32.gmra.mxu0 %v1537
        %v1605 = vpop.f32.mrf.mxu0
        %v1606 = vadd.f32 0.0, %v1605
        %v1607 = vpop.f32.mrf.mxu0
        %1608 = vdwg.mxu0
        %s1609 = scalar_lea.vmem %s393, 8
        %v1610 = vld [vmem:[%s1609] sm:$0x7]
        %v1612 = vsel %vm1460, %v1610, 0
        %1614 = vmatprep.subr.mxu0 0.0
        %1615 = vmatpush1.msra.mxu0 0.0
        %1616 = vmatprep.subr.mxu0 0.0
        %1617 = vmatpush1.msra.mxu0 0.0
        %1618 = vmatprep.subr.mxu0 0.0
        %1619 = vmatpush1.msra.mxu0 0.0
        %1620 = vmatprep.subr.mxu0 0.0
        %1621 = vmatpush1.msra.mxu0 0.0
        %1622 = vmatprep.subr.mxu0 0.0
        %1623 = vmatpush1.msra.mxu0 0.0
        %1624 = vmatprep.subr.mxu0 0.0
        %1625 = vmatpush1.msra.mxu0 0.0
        %1626 = vmatprep.subr.mxu0 0.0
        %1627 = vmatpush1.msra.mxu0 0.0
        %1628 = vmatprep.subr.mxu0 0.0
        %1629 = vmatpush1.msra.mxu0 0.0
        %1630 = vmatprep.subr.mxu0 0.0
        %1631 = vmatpush1.msra.mxu0 %v1458
        %1632 = vmatprep.subr.mxu0 0.0
        %1633 = vmatpush1.msra.mxu0 %v1457
        %1634 = vmatprep.subr.mxu0 0.0
        %1635 = vmatpush1.msra.mxu0 %v1456
        %1636 = vmatprep.subr.mxu0 0.0
        %1637 = vmatpush1.msra.mxu0 %v1455
        %1638 = vmatprep.subr.mxu0 0.0
        %1639 = vmatpush1.msra.mxu0 %v1454
        %1640 = vmatprep.subr.mxu0 0.0
        %1641 = vmatpush1.msra.mxu0 %v1453
        %1642 = vmatprep.subr.mxu0 0.0
        %1643 = vmatpush1.msra.mxu0 %v1452
        %1644 = vmatprep.subr.mxu0 0.0
        %1645 = vmatpush1.msra.mxu0 %v1451
        %1646 = vmatprep.subr.mxu0 0.0
        %1647 = vmatpush2.msra.mxu0 0.0
        %1648 = vmatprep.subr.mxu0 0.0
        %1649 = vmatpush2.msra.mxu0 0.0
        %1650 = vmatprep.subr.mxu0 0.0
        %1651 = vmatpush2.msra.mxu0 0.0
        %1652 = vmatprep.subr.mxu0 0.0
        %1653 = vmatpush2.msra.mxu0 0.0
        %1654 = vmatprep.subr.mxu0 0.0
        %1655 = vmatpush2.msra.mxu0 0.0
        %1656 = vmatprep.subr.mxu0 0.0
        %1657 = vmatpush2.msra.mxu0 0.0
        %1658 = vmatprep.subr.mxu0 0.0
        %1659 = vmatpush2.msra.mxu0 0.0
        %1660 = vmatprep.subr.mxu0 0.0
        %1661 = vmatpush2.msra.mxu0 0.0
        %1662 = vmatprep.subr.mxu0 0.0
        %1663 = vmatpush2.msra.mxu0 0.0
        %1664 = vmatprep.subr.mxu0 0.0
        %1665 = vmatpush2.msra.mxu0 0.0
        %1666 = vmatprep.subr.mxu0 0.0
        %1667 = vmatpush2.msra.mxu0 0.0
        %1668 = vmatprep.subr.mxu0 0.0
        %1669 = vmatpush2.msra.mxu0 0.0
        %1670 = vmatprep.subr.mxu0 0.0
        %1671 = vmatpush2.msra.mxu0 0.0
        %1672 = vmatprep.subr.mxu0 0.0
        %1673 = vmatpush2.msra.mxu0 0.0
        %1674 = vmatprep.subr.mxu0 0.0
        %1675 = vmatpush2.msra.mxu0 0.0
        %1676 = vmatprep.subr.mxu0 0.0
        %1677 = vmatpush2.msra.mxu0 0.0
        %1678 = vmatprep.mubr.f32.mxu0 0.0
        %1679 = vmatmul.mubr.f32.gmra.mxu0 %v1612
        %v1680 = vpop.f32.mrf.mxu0
        %v1681 = vadd.f32 0.0, %v1680
        %v1682 = vpop.f32.mrf.mxu0
        %1683 = vdwg.mxu0
        %s1684 = scalar_lea.vmem %s393, 12
        %v1685 = vld [vmem:[%s1684] sm:$0x7]
        %v1687 = vsel %vm1460, %v1685, 0
        %1689 = vmatprep.subr.mxu0 0.0
        %1690 = vmatpush1.msra.mxu0 0.0
        %1691 = vmatprep.subr.mxu0 0.0
        %1692 = vmatpush1.msra.mxu0 0.0
        %1693 = vmatprep.subr.mxu0 0.0
        %1694 = vmatpush1.msra.mxu0 0.0
        %1695 = vmatprep.subr.mxu0 0.0
        %1696 = vmatpush1.msra.mxu0 0.0
        %1697 = vmatprep.subr.mxu0 0.0
        %1698 = vmatpush1.msra.mxu0 0.0
        %1699 = vmatprep.subr.mxu0 0.0
        %1700 = vmatpush1.msra.mxu0 0.0
        %1701 = vmatprep.subr.mxu0 0.0
        %1702 = vmatpush1.msra.mxu0 0.0
        %1703 = vmatprep.subr.mxu0 0.0
        %1704 = vmatpush1.msra.mxu0 0.0
        %1705 = vmatprep.subr.mxu0 0.0
        %1706 = vmatpush1.msra.mxu0 %v1458
        %1707 = vmatprep.subr.mxu0 0.0
        %1708 = vmatpush1.msra.mxu0 %v1457
        %1709 = vmatprep.subr.mxu0 0.0
        %1710 = vmatpush1.msra.mxu0 %v1456
        %1711 = vmatprep.subr.mxu0 0.0
        %1712 = vmatpush1.msra.mxu0 %v1455
        %1713 = vmatprep.subr.mxu0 0.0
        %1714 = vmatpush1.msra.mxu0 %v1454
        %1715 = vmatprep.subr.mxu0 0.0
        %1716 = vmatpush1.msra.mxu0 %v1453
        %1717 = vmatprep.subr.mxu0 0.0
        %1718 = vmatpush1.msra.mxu0 %v1452
        %1719 = vmatprep.subr.mxu0 0.0
        %1720 = vmatpush1.msra.mxu0 %v1451
        %1721 = vmatprep.subr.mxu0 0.0
        %1722 = vmatpush2.msra.mxu0 0.0
        %1723 = vmatprep.subr.mxu0 0.0
        %1724 = vmatpush2.msra.mxu0 0.0
        %1725 = vmatprep.subr.mxu0 0.0
        %1726 = vmatpush2.msra.mxu0 0.0
        %1727 = vmatprep.subr.mxu0 0.0
        %1728 = vmatpush2.msra.mxu0 0.0
        %1729 = vmatprep.subr.mxu0 0.0
        %1730 = vmatpush2.msra.mxu0 0.0
        %1731 = vmatprep.subr.mxu0 0.0
        %1732 = vmatpush2.msra.mxu0 0.0
        %1733 = vmatprep.subr.mxu0 0.0
        %1734 = vmatpush2.msra.mxu0 0.0
        %1735 = vmatprep.subr.mxu0 0.0
        %1736 = vmatpush2.msra.mxu0 0.0
        %1737 = vmatprep.subr.mxu0 0.0
        %1738 = vmatpush2.msra.mxu0 0.0
        %1739 = vmatprep.subr.mxu0 0.0
        %1740 = vmatpush2.msra.mxu0 0.0
        %1741 = vmatprep.subr.mxu0 0.0
        %1742 = vmatpush2.msra.mxu0 0.0
        %1743 = vmatprep.subr.mxu0 0.0
        %1744 = vmatpush2.msra.mxu0 0.0
        %1745 = vmatprep.subr.mxu0 0.0
        %1746 = vmatpush2.msra.mxu0 0.0
        %1747 = vmatprep.subr.mxu0 0.0
        %1748 = vmatpush2.msra.mxu0 0.0
        %1749 = vmatprep.subr.mxu0 0.0
        %1750 = vmatpush2.msra.mxu0 0.0
        %1751 = vmatprep.subr.mxu0 0.0
        %1752 = vmatpush2.msra.mxu0 0.0
        %1753 = vmatprep.mubr.f32.mxu0 0.0
        %1754 = vmatmul.mubr.f32.gmra.mxu0 %v1687
        %v1755 = vpop.f32.mrf.mxu0
        %v1756 = vadd.f32 0.0, %v1755
        %v1757 = vpop.f32.mrf.mxu0
        %1758 = vdwg.mxu0
        %v1760 = vlaneseq
        %v1761 = vshrl.u32 %v1760, 7
        %v1762 = vsub.s32 0, %v1761
        %v1763 = vrot.slane %v770, %v1762
        %v1765 = vmul.f32 %v1531, %v1763
        %v1767 = vlaneseq
        %v1768 = vshrl.u32 %v1767, 7
        %v1769 = vsub.s32 0, %v1768
        %v1770 = vrot.slane %v1110, %v1769
        %v1772 = vmul.f32 %v1606, %v1770
        %v1773 = vadd.f32 %v1765, %v1772
        %v1775 = vlaneseq
        %v1776 = vshrl.u32 %v1775, 7
        %v1777 = vsub.s32 0, %v1776
        %v1778 = vrot.slane %v1450, %v1777
        %v1780 = vmul.f32 %v1681, %v1778
        %v1781 = vadd.f32 %v1773, %v1780
        %v1782 = vadd.f32 %v1781, %v1756
        %1783 = vst [vmem:[%s401] sm:$0x7] %v1782
        %p1784 = scmp.lt.s32.totalorder %s27, 1
        %s1785 = scalar_select %p1784, %s27, 1
        %p1786 = scmp.lt.s32.totalorder %s26, 1
        %s1787 = scalar_select %p1786, %s26, 1
        %s1788 = smul.addr %s1785, 2
        %s1789 = sadd.s32 %s1787, %s1788
        %s1790 = smul.addr %s1789, 4
        %s1791 = scalar_lea.vmem %s5, %s1790
        // Predicated region
        $region83: #{tpu_custom_call.1} parent=69 // pred_check
          %p1792 = pneg %p184
        $region84: #{tpu_custom_call.1} parent=69 // pred_check_branch
          %1794 = sbr.rel (%p1792) target = $region86
        $region85: #{tpu_custom_call.1} parent=69 // pred_region
          _
        $region86: #{tpu_custom_call.1} parent=69 // pred_fallthru
          _
      $region70: #{tpu_custom_call.1} parent=5 // pred_fallthru
        _
      %p1795 = scmp.le.s32.totalorder 2, %s17
      // Predicated region
      $region87: #{tpu_custom_call.1} parent=5 // pred_check
        %p1796 = pneg %p1795
      $region88: #{tpu_custom_call.1} parent=5 // pred_check_branch
        %1798 = sbr.rel (%p1796) target = $region90
      $region89: #{tpu_custom_call.1} parent=5 // pred_region
        %s1799 = ssub.s32 %s17, 2
        // Predicated region
        $region91: #{tpu_custom_call.1} parent=89 // pred_check
          %p1800 = pneg %p190
        $region92: #{tpu_custom_call.1} parent=89 // pred_check_branch
          %1802 = sbr.rel (%p1800) target = $region94
        $region93: #{tpu_custom_call.1} parent=89 // pred_region
          %p1803 = scmp.lt.s32.totalorder %s29, 1
          %s1804 = scalar_select %p1803, %s29, 1
          %p1805 = scmp.lt.s32.totalorder %s28, 1
          %s1806 = scalar_select %p1805, %s28, 1
          %s1807 = smul.addr %s1804, 2
          %s1808 = sadd.s32 %s1806, %s1807
          %s1809 = smul.addr %s1808, 4
          %s1810 = scalar_lea.vmem %s5, %s1809
        $region94: #{tpu_custom_call.1} parent=89 // pred_fallthru
          _
      $region90: #{tpu_custom_call.1} parent=5 // pred_fallthru
        _
    $region6: #{tpu_custom_call.1} parent=1 // loop_footer
      %s21 = sadd.s32 1, %s17
    $region7: #{tpu_custom_call.1} parent=1 // loop_footer_branch
      %16 = sbr.rel target = $region3
    $region8: #{tpu_custom_call.1} parent=1 // loop_exit
      _
    %1811 = vsyncpa [#allocation3], 1
    %s1812 = scalar_lea.sflag [#allocation3], 1
    %1813 = vsyncpa %s1812, 1
    %1814 = vsyncpa [#allocation6], 1
    %s1815 = scalar_lea.sflag [#allocation6], 1
    %1816 = vsyncpa %s1815, 1

</llo_original>
